<compile_context>
chip_gen: v7x
topology: tpu7x:2x2x1
jax: 0.10.0
libtpu: 0.0.40
codegen_flags: <defaults>
</compile_context>

<pallas_src>
import functools

import jax
import jax.numpy as jnp
from jax import lax
from jax.experimental import pallas as pl
from jax.experimental.pallas import tpu as pltpu


def _mha_kernel(xq_ref, xkv_ref, wq_ref, wkv_ref, fw_ref, fb_ref, o_ref, *,
                n_heads, head_dim, block_q, scale, compute_dtype, approx_recip):
    qi = pl.program_id(1)
    H, C = n_heads, head_dim
    HC = H * C
    T = xkv_ref.shape[1]

    x_q = xq_ref[0].astype(compute_dtype)        # (TQ, C)   query rows
    x_kv = xkv_ref[0].astype(compute_dtype)      # (T,  C)   all key/value rows

    # Wide fused projections: one matmul for Q (all heads), one for K|V.
    q = jnp.dot(x_q, wq_ref[...], preferred_element_type=jnp.float32)      # (TQ, HC)
    kv = jnp.dot(x_kv, wkv_ref[...], preferred_element_type=jnp.float32)   # (T, 2*HC)

    # Fold the 1/sqrt(C) softmax scale into q (mask uses -inf, so masking
    # before vs. after scaling is equivalent for scale > 0).
    q = (q * scale).astype(compute_dtype)
    kv = kv.astype(compute_dtype)

    # Causal mask for this query block (hoisted out of the head loop).
    row = qi * block_q + lax.broadcasted_iota(jnp.int32, (block_q, T), 0)
    col = lax.broadcasted_iota(jnp.int32, (block_q, T), 1)
    causal = col <= row

    ctx_parts = []
    for h in range(H):                            # static unroll, static slices
        qh = q[:, h * C:(h + 1) * C]              # (TQ, C)
        kh = kv[:, h * C:(h + 1) * C]             # (T,  C)
        vh = kv[:, HC + h * C:HC + (h + 1) * C]   # (T,  C)
        # q @ k^T without an explicit transpose: contract both last dims.
        s = lax.dot_general(qh, kh, (((1,), (1,)), ((), ())),
                            preferred_element_type=jnp.float32)            # (TQ, T)
        s = jnp.where(causal, s, -jnp.inf)
        m = jnp.max(s, axis=-1, keepdims=True)
        e = jnp.exp(s - m)
        w = e * pl.reciprocal(jnp.sum(e, axis=-1, keepdims=True),
                              approx=approx_recip)
        ctx_parts.append(jnp.dot(w.astype(compute_dtype), vh,
                                 preferred_element_type=jnp.float32))      # (TQ, C)

    # Head-major context (columns h*C + c), matching the fc input layout.
    ctx = jnp.concatenate(ctx_parts, axis=-1).astype(compute_dtype)        # (TQ, HC)

    # Single wide, lane-dense output projection + bias (f32 add).
    out = jnp.dot(ctx, fw_ref[...], preferred_element_type=jnp.float32)
    out = out + fb_ref[...].astype(jnp.float32)
    o_ref[0] = out.astype(o_ref.dtype)


def prepare_decoder_mha_params(wq, wk, wv, fc_w, fc_b, n_heads, *,
                               compute_dtype=jnp.bfloat16):
    """One-time parameter repacking (call at setup, NOT per forward).

    Reorders projection columns to head-major (h*C + c), fuses K|V into one
    weight block, pads the fc output dim to a multiple of 128 lanes, and casts
    weights to the MXU compute dtype.
    """
    C = wq.shape[0]
    H = n_heads
    HC = H * C
    O = fc_w.shape[1]
    O_pad = max(128, ((O + 127) // 128) * 128)

    def head_major(w):  # column c*H + h  ->  column h*C + c
        return jnp.transpose(w.reshape(C, C, H), (0, 2, 1)).reshape(C, HC)

    wq_hm = head_major(wq).astype(compute_dtype)
    wkv_hm = jnp.concatenate([head_major(wk), head_major(wv)],
                             axis=1).astype(compute_dtype)                 # (C, 2*HC)
    fc_w_pad = jnp.zeros((HC, O_pad), compute_dtype).at[:, :O].set(
        fc_w.astype(compute_dtype))
    fc_b_pad = jnp.zeros((1, O_pad), jnp.float32).at[0, :O].set(
        fc_b.astype(jnp.float32))

    return dict(wq=wq_hm, wkv=wkv_hm, fc_w=fc_w_pad, fc_b=fc_b_pad,
                n_heads=H, head_dim=C, out_dim=O, compute_dtype=compute_dtype)


def decoder_mha_prepared(x, params, *, block_q=256):
    B, T, C = x.shape
    assert C == params["head_dim"]
    H = params["n_heads"]
    HC = H * C
    O = params["out_dim"]
    O_pad = params["fc_w"].shape[1]
    compute_dtype = params["compute_dtype"]
    approx_recip = jnp.dtype(compute_dtype).itemsize < 4

    if block_q > T or T % block_q != 0 or block_q % 8 != 0:
        block_q = T
    num_q = T // block_q

    kernel = functools.partial(
        _mha_kernel, n_heads=H, head_dim=C, block_q=block_q,
        scale=1.0 / (float(C) ** 0.5), compute_dtype=compute_dtype,
        approx_recip=approx_recip)

    # VMEM budget: double-buffered inputs/outputs + live intermediates.
    elt = 4
    est = (2 * (block_q * C + T * C + C * HC + C * 2 * HC + HC * O_pad + O_pad)
           + 2 * block_q * O_pad
           + block_q * HC + T * 2 * HC + 4 * block_q * T + 2 * block_q * HC) * elt
    vmem_limit = int(min(100 * 2 ** 20, max(32 * 2 ** 20, 2 * est)))

    grid_spec = pltpu.PrefetchScalarGridSpec(
        num_scalar_prefetch=0,
        grid=(B, num_q),
        in_specs=[
            pl.BlockSpec((1, block_q, C), lambda b, qi: (b, qi, 0)),   # x: query rows
            pl.BlockSpec((1, T, C), lambda b, qi: (b, 0, 0)),          # x: key/value rows
            pl.BlockSpec((C, HC), lambda b, qi: (0, 0)),               # Wq (head-major)
            pl.BlockSpec((C, 2 * HC), lambda b, qi: (0, 0)),           # [Wk | Wv]
            pl.BlockSpec((HC, O_pad), lambda b, qi: (0, 0)),           # fc weight (padded)
            pl.BlockSpec((1, O_pad), lambda b, qi: (0, 0)),            # fc bias (padded)
        ],
        out_specs=pl.BlockSpec((1, block_q, O_pad), lambda b, qi: (b, qi, 0)),
    )

    out_pad = pl.pallas_call(
        kernel,
        out_shape=jax.ShapeDtypeStruct((B, T, O_pad), x.dtype),
        grid_spec=grid_spec,
        compiler_params=pltpu.CompilerParams(
            dimension_semantics=("parallel", "parallel"),
            vmem_limit_bytes=vmem_limit),
    )(x, x, params["wq"], params["wkv"], params["fc_w"], params["fc_b"])

    return out_pad[:, :, :O]


def decoder_mha(x, wq, wk, wv, fc_w, fc_b, n_heads, *,
                compute_dtype=jnp.bfloat16, block_q=256):
    """Convenience wrapper.  In a real model, call prepare_* once at setup."""
    params = prepare_decoder_mha_params(wq, wk, wv, fc_w, fc_b, n_heads,
                                        compute_dtype=compute_dtype)
    return decoder_mha_prepared(x, params, block_q=block_q)


def decoder_mha_reference(x, wq, wk, wv, fc_w, fc_b, n_heads):
    """Pure-JAX mirror of the PyTorch forward, for verification."""
    B, T, C = x.shape
    H = n_heads
    k = (x @ wk).reshape(B, T, C, H).transpose(0, 3, 1, 2)
    q = (x @ wq).reshape(B, T, C, H).transpose(0, 3, 1, 2)
    v = (x @ wv).reshape(B, T, C, H).transpose(0, 3, 1, 2)
    mask = jnp.tril(jnp.ones((T, T)))
    s = q @ jnp.swapaxes(k, 2, 3)
    s = jnp.where(mask == 0, -jnp.inf, s)
    s = s / (C ** 0.5)
    w = jax.nn.softmax(s, axis=-1)
    out = jnp.swapaxes(w @ v, 1, 2).reshape(B, T, H * C)
    return out @ fc_w + fc_b


if __name__ == "__main__":
    B, T, C, H, O = 2, 8, 16, 4, 32  # batch, seq, embedding, heads, output_dim

    key = jax.random.PRNGKey(0)
    kx, kq, kk, kv, kw, kb = jax.random.split(key, 6)

    x = jax.random.normal(kx, (B, T, C), dtype=jnp.float32)
    wq = jax.random.normal(kq, (C, C * H), dtype=jnp.float32) * 0.1
    wk = jax.random.normal(kk, (C, C * H), dtype=jnp.float32) * 0.1
    wv = jax.random.normal(kv, (C, C * H), dtype=jnp.float32) * 0.1
    fc_w = jax.random.normal(kw, (C * H, O), dtype=jnp.float32) * 0.1
    fc_b = jax.random.normal(kb, (O,), dtype=jnp.float32) * 0.1

    ref = decoder_mha_reference(x, wq, wk, wv, fc_w, fc_b, H)

    # Exact path (f32 MXU operands): must match the module tightly.
    params_f32 = prepare_decoder_mha_params(wq, wk, wv, fc_w, fc_b, H,
                                            compute_dtype=jnp.float32)
    out_f32 = jax.block_until_ready(decoder_mha_prepared(x, params_f32))
    assert out_f32.shape == (B, T, O)
    err_f32 = jnp.max(jnp.abs(out_f32 - ref))
    assert jnp.allclose(out_f32, ref, rtol=1e-4, atol=1e-4), (
        f"f32 path max abs err = {err_f32}")

    # Perf path (bf16 MXU operands, f32 accumulation): looser tolerance.
    params_bf16 = prepare_decoder_mha_params(wq, wk, wv, fc_w, fc_b, H,
                                             compute_dtype=jnp.bfloat16)
    out_bf16 = jax.block_until_ready(decoder_mha_prepared(x, params_bf16))
    assert out_bf16.shape == (B, T, O)
    err_bf16 = jnp.max(jnp.abs(out_bf16 - ref))
    assert jnp.allclose(out_bf16, ref, rtol=5e-2, atol=5e-2), (
        f"bf16 path max abs err = {err_bf16}")

    print("KERNEL_OK")
</pallas_src>

<mosaic_0001>
module attributes {stable_mosaic.version = 11 : i64} {
  func.func @_mha_kernel(%arg0: i32, %arg1: i32, %arg2: memref<1x8x16xf32, #tpu.memory_space<vmem>>, %arg3: memref<1x8x16xf32, #tpu.memory_space<vmem>>, %arg4: memref<16x64xf32, #tpu.memory_space<vmem>>, %arg5: memref<16x128xf32, #tpu.memory_space<vmem>>, %arg6: memref<64x128xf32, #tpu.memory_space<vmem>>, %arg7: memref<1x128xf32, #tpu.memory_space<vmem>>, %arg8: memref<1x8x128xf32, #tpu.memory_space<vmem>>) attributes {dimension_semantics = [#tpu.dimension_semantics<parallel>, #tpu.dimension_semantics<parallel>], iteration_bounds = array<i64: 2, 1>, scalar_prefetch = 0 : i64, scratch_operands = 0 : i64, tpu.core_type = #tpu.core_type<tc>, window_params = [{transform_indices = @transform_0, window_bounds = array<i64: 1, 8, 16>}, {transform_indices = @transform_1, window_bounds = array<i64: 1, 8, 16>}, {pipeline_mode = #tpu.pipeline_mode<synchronous>, transform_indices = @transform_2, window_bounds = array<i64: 16, 64>}, {pipeline_mode = #tpu.pipeline_mode<synchronous>, transform_indices = @transform_3, window_bounds = array<i64: 16, 128>}, {pipeline_mode = #tpu.pipeline_mode<synchronous>, transform_indices = @transform_4, window_bounds = array<i64: 64, 128>}, {pipeline_mode = #tpu.pipeline_mode<synchronous>, transform_indices = @transform_5, window_bounds = array<i64: 1, 128>}, {transform_indices = @transform_6, window_bounds = array<i64: 1, 8, 128>}]} {
    %c0 = arith.constant 0 : index
    %c0_0 = arith.constant 0 : index
    %c0_1 = arith.constant 0 : index
    %0 = vector.load %arg2[%c0, %c0_0, %c0_1] : memref<1x8x16xf32, #tpu.memory_space<vmem>>, vector<1x8x16xf32>
    %1 = vector.shape_cast %0 : vector<1x8x16xf32> to vector<8x16xf32>
    %c0_2 = arith.constant 0 : index
    %c0_3 = arith.constant 0 : index
    %c0_4 = arith.constant 0 : index
    %2 = vector.load %arg3[%c0_2, %c0_3, %c0_4] : memref<1x8x16xf32, #tpu.memory_space<vmem>>, vector<1x8x16xf32>
    %3 = vector.shape_cast %2 : vector<1x8x16xf32> to vector<8x16xf32>
    %c0_5 = arith.constant 0 : index
    %c0_6 = arith.constant 0 : index
    %4 = vector.load %arg4[%c0_5, %c0_6] : memref<16x64xf32, #tpu.memory_space<vmem>>, vector<16x64xf32>
    %cst = arith.constant dense<0.000000e+00> : vector<8x64xf32>
    %5 = tpu.matmul %1, %4, %cst {dimension_numbers = #tpu.dot_dimension_numbers<[1], [0], [0], [1], [0, 0, 1, 1], [], []>} : vector<8x16xf32>, vector<16x64xf32>, vector<8x64xf32> -> vector<8x64xf32>
    %c0_7 = arith.constant 0 : index
    %c0_8 = arith.constant 0 : index
    %6 = vector.load %arg5[%c0_7, %c0_8] : memref<16x128xf32, #tpu.memory_space<vmem>>, vector<16x128xf32>
    %cst_9 = arith.constant dense<0.000000e+00> : vector<8x128xf32>
    %7 = tpu.matmul %3, %6, %cst_9 {dimension_numbers = #tpu.dot_dimension_numbers<[1], [0], [0], [1], [0, 0, 1, 1], [], []>} : vector<8x16xf32>, vector<16x128xf32>, vector<8x128xf32> -> vector<8x128xf32>
    %cst_10 = arith.constant 2.500000e-01 : f32
    %8 = vector.broadcast %cst_10 : f32 to vector<8x64xf32>
    %9 = arith.mulf %5, %8 : vector<8x64xf32>
    %c8_i32 = arith.constant 8 : i32
    %10 = arith.muli %arg1, %c8_i32 : i32
    %11 = tpu.iota {dimensions = array<i32: 0>} : vector<8x8xi32>
    %12 = vector.broadcast %10 : i32 to vector<8x8xi32>
    %13 = arith.addi %12, %11 : vector<8x8xi32>
    %14 = tpu.iota {dimensions = array<i32: 1>} : vector<8x8xi32>
    %15 = arith.cmpi sle, %14, %13 : vector<8x8xi32>
    %16 = vector.extract_strided_slice %9 {offsets = [0, 0], sizes = [8, 16], strides = [1, 1]} : vector<8x64xf32> to vector<8x16xf32>
    %17 = vector.extract_strided_slice %7 {offsets = [0, 0], sizes = [8, 16], strides = [1, 1]} : vector<8x128xf32> to vector<8x16xf32>
    %18 = vector.extract_strided_slice %7 {offsets = [0, 64], sizes = [8, 16], strides = [1, 1]} : vector<8x128xf32> to vector<8x16xf32>
    %cst_11 = arith.constant dense<0.000000e+00> : vector<8x8xf32>
    %19 = tpu.matmul %16, %17, %cst_11 {dimension_numbers = #tpu.dot_dimension_numbers<[1], [1], [0], [0], [0, 0, 1, 0], [], []>} : vector<8x16xf32>, vector<8x16xf32>, vector<8x8xf32> -> vector<8x8xf32>
    %cst_12 = arith.constant 0xFF800000 : f32
    %20 = vector.broadcast %cst_12 : f32 to vector<8x8xf32>
    %21 = arith.select %15, %19, %20 : vector<8x8xi1>, vector<8x8xf32>
    %cst_13 = arith.constant dense<0xFF800000> : vector<8xf32>
    %22 = vector.multi_reduction <maximumf>, %21, %cst_13 [1] : vector<8x8xf32> to vector<8xf32>
    %23 = vector.shape_cast %22 : vector<8xf32> to vector<8x1xf32>
    %24 = vector.broadcast %23 : vector<8x1xf32> to vector<8x8xf32>
    %25 = arith.subf %21, %24 : vector<8x8xf32>
    %26 = math.exp %25 : vector<8x8xf32>
    %cst_14 = arith.constant dense<0.000000e+00> : vector<8xf32>
    %27 = vector.multi_reduction <add>, %26, %cst_14 [1] : vector<8x8xf32> to vector<8xf32>
    %28 = vector.shape_cast %27 : vector<8xf32> to vector<8x1xf32>
    %29 = tpu.reciprocal %28 : vector<8x1xf32> -> vector<8x1xf32>
    %30 = vector.broadcast %29 : vector<8x1xf32> to vector<8x8xf32>
    %31 = arith.mulf %26, %30 : vector<8x8xf32>
    %cst_15 = arith.constant dense<0.000000e+00> : vector<8x16xf32>
    %32 = tpu.matmul %31, %18, %cst_15 {dimension_numbers = #tpu.dot_dimension_numbers<[1], [0], [0], [1], [0, 0, 1, 1], [], []>} : vector<8x8xf32>, vector<8x16xf32>, vector<8x16xf32> -> vector<8x16xf32>
    %33 = vector.extract_strided_slice %9 {offsets = [0, 16], sizes = [8, 16], strides = [1, 1]} : vector<8x64xf32> to vector<8x16xf32>
    %34 = vector.extract_strided_slice %7 {offsets = [0, 16], sizes = [8, 16], strides = [1, 1]} : vector<8x128xf32> to vector<8x16xf32>
    %35 = vector.extract_strided_slice %7 {offsets = [0, 80], sizes = [8, 16], strides = [1, 1]} : vector<8x128xf32> to vector<8x16xf32>
    %cst_16 = arith.constant dense<0.000000e+00> : vector<8x8xf32>
    %36 = tpu.matmul %33, %34, %cst_16 {dimension_numbers = #tpu.dot_dimension_numbers<[1], [1], [0], [0], [0, 0, 1, 0], [], []>} : vector<8x16xf32>, vector<8x16xf32>, vector<8x8xf32> -> vector<8x8xf32>
    %cst_17 = arith.constant 0xFF800000 : f32
    %37 = vector.broadcast %cst_17 : f32 to vector<8x8xf32>
    %38 = arith.select %15, %36, %37 : vector<8x8xi1>, vector<8x8xf32>
    %cst_18 = arith.constant dense<0xFF800000> : vector<8xf32>
    %39 = vector.multi_reduction <maximumf>, %38, %cst_18 [1] : vector<8x8xf32> to vector<8xf32>
    %40 = vector.shape_cast %39 : vector<8xf32> to vector<8x1xf32>
    %41 = vector.broadcast %40 : vector<8x1xf32> to vector<8x8xf32>
    %42 = arith.subf %38, %41 : vector<8x8xf32>
    %43 = math.exp %42 : vector<8x8xf32>
    %cst_19 = arith.constant dense<0.000000e+00> : vector<8xf32>
    %44 = vector.multi_reduction <add>, %43, %cst_19 [1] : vector<8x8xf32> to vector<8xf32>
    %45 = vector.shape_cast %44 : vector<8xf32> to vector<8x1xf32>
    %46 = tpu.reciprocal %45 : vector<8x1xf32> -> vector<8x1xf32>
    %47 = vector.broadcast %46 : vector<8x1xf32> to vector<8x8xf32>
    %48 = arith.mulf %43, %47 : vector<8x8xf32>
    %cst_20 = arith.constant dense<0.000000e+00> : vector<8x16xf32>
    %49 = tpu.matmul %48, %35, %cst_20 {dimension_numbers = #tpu.dot_dimension_numbers<[1], [0], [0], [1], [0, 0, 1, 1], [], []>} : vector<8x8xf32>, vector<8x16xf32>, vector<8x16xf32> -> vector<8x16xf32>
    %50 = vector.extract_strided_slice %9 {offsets = [0, 32], sizes = [8, 16], strides = [1, 1]} : vector<8x64xf32> to vector<8x16xf32>
    %51 = vector.extract_strided_slice %7 {offsets = [0, 32], sizes = [8, 16], strides = [1, 1]} : vector<8x128xf32> to vector<8x16xf32>
    %52 = vector.extract_strided_slice %7 {offsets = [0, 96], sizes = [8, 16], strides = [1, 1]} : vector<8x128xf32> to vector<8x16xf32>
    %cst_21 = arith.constant dense<0.000000e+00> : vector<8x8xf32>
    %53 = tpu.matmul %50, %51, %cst_21 {dimension_numbers = #tpu.dot_dimension_numbers<[1], [1], [0], [0], [0, 0, 1, 0], [], []>} : vector<8x16xf32>, vector<8x16xf32>, vector<8x8xf32> -> vector<8x8xf32>
    %cst_22 = arith.constant 0xFF800000 : f32
    %54 = vector.broadcast %cst_22 : f32 to vector<8x8xf32>
    %55 = arith.select %15, %53, %54 : vector<8x8xi1>, vector<8x8xf32>
    %cst_23 = arith.constant dense<0xFF800000> : vector<8xf32>
    %56 = vector.multi_reduction <maximumf>, %55, %cst_23 [1] : vector<8x8xf32> to vector<8xf32>
    %57 = vector.shape_cast %56 : vector<8xf32> to vector<8x1xf32>
    %58 = vector.broadcast %57 : vector<8x1xf32> to vector<8x8xf32>
    %59 = arith.subf %55, %58 : vector<8x8xf32>
    %60 = math.exp %59 : vector<8x8xf32>
    %cst_24 = arith.constant dense<0.000000e+00> : vector<8xf32>
    %61 = vector.multi_reduction <add>, %60, %cst_24 [1] : vector<8x8xf32> to vector<8xf32>
    %62 = vector.shape_cast %61 : vector<8xf32> to vector<8x1xf32>
    %63 = tpu.reciprocal %62 : vector<8x1xf32> -> vector<8x1xf32>
    %64 = vector.broadcast %63 : vector<8x1xf32> to vector<8x8xf32>
    %65 = arith.mulf %60, %64 : vector<8x8xf32>
    %cst_25 = arith.constant dense<0.000000e+00> : vector<8x16xf32>
    %66 = tpu.matmul %65, %52, %cst_25 {dimension_numbers = #tpu.dot_dimension_numbers<[1], [0], [0], [1], [0, 0, 1, 1], [], []>} : vector<8x8xf32>, vector<8x16xf32>, vector<8x16xf32> -> vector<8x16xf32>
    %67 = vector.extract_strided_slice %9 {offsets = [0, 48], sizes = [8, 16], strides = [1, 1]} : vector<8x64xf32> to vector<8x16xf32>
    %68 = vector.extract_strided_slice %7 {offsets = [0, 48], sizes = [8, 16], strides = [1, 1]} : vector<8x128xf32> to vector<8x16xf32>
    %69 = vector.extract_strided_slice %7 {offsets = [0, 112], sizes = [8, 16], strides = [1, 1]} : vector<8x128xf32> to vector<8x16xf32>
    %cst_26 = arith.constant dense<0.000000e+00> : vector<8x8xf32>
    %70 = tpu.matmul %67, %68, %cst_26 {dimension_numbers = #tpu.dot_dimension_numbers<[1], [1], [0], [0], [0, 0, 1, 0], [], []>} : vector<8x16xf32>, vector<8x16xf32>, vector<8x8xf32> -> vector<8x8xf32>
    %cst_27 = arith.constant 0xFF800000 : f32
    %71 = vector.broadcast %cst_27 : f32 to vector<8x8xf32>
    %72 = arith.select %15, %70, %71 : vector<8x8xi1>, vector<8x8xf32>
    %cst_28 = arith.constant dense<0xFF800000> : vector<8xf32>
    %73 = vector.multi_reduction <maximumf>, %72, %cst_28 [1] : vector<8x8xf32> to vector<8xf32>
    %74 = vector.shape_cast %73 : vector<8xf32> to vector<8x1xf32>
    %75 = vector.broadcast %74 : vector<8x1xf32> to vector<8x8xf32>
    %76 = arith.subf %72, %75 : vector<8x8xf32>
    %77 = math.exp %76 : vector<8x8xf32>
    %cst_29 = arith.constant dense<0.000000e+00> : vector<8xf32>
    %78 = vector.multi_reduction <add>, %77, %cst_29 [1] : vector<8x8xf32> to vector<8xf32>
    %79 = vector.shape_cast %78 : vector<8xf32> to vector<8x1xf32>
    %80 = tpu.reciprocal %79 : vector<8x1xf32> -> vector<8x1xf32>
    %81 = vector.broadcast %80 : vector<8x1xf32> to vector<8x8xf32>
    %82 = arith.mulf %77, %81 : vector<8x8xf32>
    %cst_30 = arith.constant dense<0.000000e+00> : vector<8x16xf32>
    %83 = tpu.matmul %82, %69, %cst_30 {dimension_numbers = #tpu.dot_dimension_numbers<[1], [0], [0], [1], [0, 0, 1, 1], [], []>} : vector<8x8xf32>, vector<8x16xf32>, vector<8x16xf32> -> vector<8x16xf32>
    %84 = tpu.concatenate %32, %49, %66, %83 in 1 : vector<8x16xf32>, vector<8x16xf32>, vector<8x16xf32>, vector<8x16xf32> -> vector<8x64xf32>
    %c0_31 = arith.constant 0 : index
    %c0_32 = arith.constant 0 : index
    %85 = vector.load %arg6[%c0_31, %c0_32] : memref<64x128xf32, #tpu.memory_space<vmem>>, vector<64x128xf32>
    %cst_33 = arith.constant dense<0.000000e+00> : vector<8x128xf32>
    %86 = tpu.matmul %84, %85, %cst_33 {dimension_numbers = #tpu.dot_dimension_numbers<[1], [0], [0], [1], [0, 0, 1, 1], [], []>} : vector<8x64xf32>, vector<64x128xf32>, vector<8x128xf32> -> vector<8x128xf32>
    %c0_34 = arith.constant 0 : index
    %c0_35 = arith.constant 0 : index
    %87 = vector.load %arg7[%c0_34, %c0_35] : memref<1x128xf32, #tpu.memory_space<vmem>>, vector<1x128xf32>
    %88 = vector.broadcast %87 : vector<1x128xf32> to vector<8x128xf32>
    %89 = arith.addf %86, %88 : vector<8x128xf32>
    %c0_36 = arith.constant 0 : index
    %c0_37 = arith.constant 0 : index
    %c0_38 = arith.constant 0 : index
    %90 = vector.load %arg8[%c0_36, %c0_37, %c0_38] : memref<1x8x128xf32, #tpu.memory_space<vmem>>, vector<1x8x128xf32>
    %91 = vector.shape_cast %90 : vector<1x8x128xf32> to vector<8x128xf32>
    %92 = vector.shape_cast %89 : vector<8x128xf32> to vector<1x8x128xf32>
    tpu.vector_store %arg8[%c0_36, %c0_37, %c0_38], %92 {strides = array<i32>} : memref<1x8x128xf32, #tpu.memory_space<vmem>>, vector<1x8x128xf32>,
    return
  }
  func.func @transform_0(%arg0: i32, %arg1: i32) -> (i32, i32, i32) {
    %c0_i32 = arith.constant 0 : i32
    %c0_i32_0 = arith.constant 0 : i32
    return %arg0, %arg1, %c0_i32 : i32, i32, i32
  }
  func.func @transform_1(%arg0: i32, %arg1: i32) -> (i32, i32, i32) {
    %c0_i32 = arith.constant 0 : i32
    %c0_i32_0 = arith.constant 0 : i32
    %c0_i32_1 = arith.constant 0 : i32
    return %arg0, %c0_i32, %c0_i32_0 : i32, i32, i32
  }
  func.func @transform_2(%arg0: i32, %arg1: i32) -> (i32, i32) {
    %c0_i32 = arith.constant 0 : i32
    %c0_i32_0 = arith.constant 0 : i32
    %c0_i32_1 = arith.constant 0 : i32
    return %c0_i32, %c0_i32_0 : i32, i32
  }
  func.func @transform_3(%arg0: i32, %arg1: i32) -> (i32, i32) {
    %c0_i32 = arith.constant 0 : i32
    %c0_i32_0 = arith.constant 0 : i32
    %c0_i32_1 = arith.constant 0 : i32
    return %c0_i32, %c0_i32_0 : i32, i32
  }
  func.func @transform_4(%arg0: i32, %arg1: i32) -> (i32, i32) {
    %c0_i32 = arith.constant 0 : i32
    %c0_i32_0 = arith.constant 0 : i32
    %c0_i32_1 = arith.constant 0 : i32
    return %c0_i32, %c0_i32_0 : i32, i32
  }
  func.func @transform_5(%arg0: i32, %arg1: i32) -> (i32, i32) {
    %c0_i32 = arith.constant 0 : i32
    %c0_i32_0 = arith.constant 0 : i32
    %c0_i32_1 = arith.constant 0 : i32
    return %c0_i32, %c0_i32_0 : i32, i32
  }
  func.func @transform_6(%arg0: i32, %arg1: i32) -> (i32, i32, i32) {
    %c0_i32 = arith.constant 0 : i32
    %c0_i32_0 = arith.constant 0 : i32
    return %arg0, %arg1, %c0_i32 : i32, i32, i32
  }
}

</mosaic_0001>

<llo_original>
// kernel: tpu_custom_call.1
$region0: #{tpu_custom_call.1}
  #allocation0 [shape = 'u32[]', space=smem, size = 0x4, offset = 0x4, fixed_abs, tag = 'smem constant byte address 0x4 - core index']
  #allocation1 [shape = 'u32[144,128]{1,0:T(1,128)}', space=vmem, size = 0x12000, scoped, tag = 'internal scratch']
  %s0 = inlined_call_operand.hbm [shape: f32[2,8,16], index: 0, kind: input, shape index: {}]
  %s1 = inlined_call_operand.hbm [shape: f32[2,8,16], index: 1, kind: input, shape index: {}]
  %s2 = inlined_call_operand.hbm [shape: f32[16,64], index: 2, kind: input, shape index: {}]
  %s3 = inlined_call_operand.hbm [shape: f32[16,128], index: 3, kind: input, shape index: {}]
  %s4 = inlined_call_operand.hbm [shape: f32[64,128], index: 4, kind: input, shape index: {}]
  %s5 = inlined_call_operand.vmem [shape: f32[1,128], index: 5, kind: input, shape index: {}]
  %s6 = inlined_call_operand.hbm [shape: f32[2,8,128], index: 6, kind: output, shape index: {}]
  %s7 = sld [smem:[#allocation0]]
  $region77: #{tpu_custom_call.1} parent=0
    _
  %s9 = ssub.s32 1, %s7
  %s10 = scalar_select 0, %s9, %s7
  $region1: #{tpu_custom_call.1} parent=0
    #allocation2 [shape = 'u8[8192]{0}', space=vmem, size = 0x2000, scoped, tag = 'input window, operand 0']
    #allocation3 [shape = 's32[2]{0}', space=sflag, size = 0x8, scoped, tag = 'scoped memory for tpu_custom_call.1']
    #allocation4 [shape = 's32[2]{0}', space=sflag, size = 0x8, scoped, tag = 'scoped memory for tpu_custom_call.1']
    #allocation5 [shape = 'u8[8192]{0}', space=vmem, size = 0x2000, scoped, tag = 'input window, operand 1']
    #allocation6 [shape = 's32[2]{0}', space=sflag, size = 0x8, scoped, tag = 'scoped memory for tpu_custom_call.1']
    #allocation7 [shape = 'u8[8192]{0}', space=vmem, size = 0x2000, scoped, tag = 'input window, operand 2, single buffered']
    #allocation8 [shape = 'u8[8192]{0}', space=vmem, size = 0x2000, scoped, tag = 'input window, operand 3, single buffered']
    #allocation9 [shape = 's32[1]{0}', space=sflag, size = 0x4, scoped, tag = 'scoped memory for tpu_custom_call.1']
    #allocation10 [shape = 'u8[32768]{0}', space=vmem, size = 0x8000, scoped, tag = 'input window, operand 4, single buffered']
    #allocation11 [shape = 'u8[8192]{0}', space=vmem, size = 0x2000, scoped, tag = 'output window, operand 0']
    %11 = vsyncpa [#allocation3], 0
    %s12 = scalar_lea.sflag [#allocation3], 1
    %13 = vsyncpa %s12, 0
    %14 = vsyncpa [#allocation6], 0
    %s15 = scalar_lea.sflag [#allocation6], 1
    %16 = vsyncpa %s15, 0
    %17 = vsyncpa [#allocation9], 0
    %18 = vsyncpa [#allocation4], 0
    %s19 = scalar_lea.sflag [#allocation4], 1
    %20 = vsyncpa %s19, 0
    loop: start=0, step=1, limit=4
    $region2: #{tpu_custom_call.1} parent=1 // loop_pre_header
      _
    $region3: #{tpu_custom_call.1} parent=1 // loop_header
      %s22 = sphi 0, %s26
      %p23 = scmp.ge.s32.totalorder %s22, 4
      %s29 = sphi 0, %s41
      %s30 = sphi 0, %s37
      %s31 = sphi 0, %s29
      %s32 = sphi 0, %s30
      %s33 = sphi 0, %s31
      %s34 = sphi 0, %s32
      %s46 = sphi 0, %s48
      %s49 = sphi 0, %s46
      %s50 = sphi 0, %s49
      %s66 = sphi 0, %s50
      %s72 = sphi 0, %s74
      %s75 = sphi 0, %s72
      %s76 = sphi 0, %s75
      %s92 = sphi 0, %s76
      %s96 = sphi 0, %s96
      %s98 = sphi 0, %s96
      %s99 = sphi 0, %s98
      %s113 = sphi 0, %s99
      %s117 = sphi 0, %s117
      %s119 = sphi 0, %s117
      %s120 = sphi 0, %s119
      %s134 = sphi 0, %s120
      %s138 = sphi 0, %s138
      %s140 = sphi 0, %s138
      %s141 = sphi 0, %s140
      %s155 = sphi 0, %s141
      %s159 = sphi 0, %s159
      %s161 = sphi 0, %s159
      %s162 = sphi 0, %s161
      %s176 = sphi 0, %s162
      %s184 = sphi 0, %s186
      %s187 = sphi 0, %s184
      %s188 = sphi 0, %s187
      %s204 = sphi 0, %s188
    $region4: #{tpu_custom_call.1} parent=1 // loop_header_branch
      %25 = sbr.rel (%p23) target = $region8
    $region5: #{tpu_custom_call.1} parent=1 // loop_body
      %s27 = ssub.s32 %s22, 1
      %s28 = ssub.s32 %s22, 2
      %s35 = sadd.s32 1, %s30
      %p36 = scmp.ge.s32.totalorder %s35, 1
      %s37 = scalar_select %p36, 0, %s35
      %s38 = sadd.s32 1, %s29
      %s39 = scalar_select %p36, %s38, %s29
      %p40 = scmp.ge.s32.totalorder %s39, 2
      %s41 = scalar_select %p40, 0, %s39
      %s42 = ssub.s32 %s29, %s41
      %s43 = ssub.s32 %s30, %s37
      %s44 = sor.u32 %s42, %s43
      %p45 = scmp.eq.s32.totalorder %s44, 0
      %s47 = sadd.s32 %s46, 1
      %s48 = scalar_select %p45, %s46, %s47
      %p51 = pneg %p45
      %p52 = scmp.eq.s32.totalorder %s22, 1
      %p53 = por %p51, %p52
      %p54 = scmp.ne.s32.totalorder %s46, %s49
      %p55 = scmp.eq.s32.totalorder %s22, 0
      %p56 = por %p54, %p55
      %p57 = scmp.ne.s32.totalorder %s46, %s49
      %p58 = scmp.eq.s32.totalorder %s27, 1
      %p59 = por %p57, %p58
      %p60 = scmp.ne.s32.totalorder %s49, %s50
      %p61 = scmp.eq.s32.totalorder %s27, 0
      %p62 = por %p60, %p61
      %p63 = scmp.ne.s32.totalorder %s49, %s50
      %p64 = scmp.eq.s32.totalorder %s28, 1
      %p65 = por %p63, %p64
      %p67 = scmp.ne.s32.totalorder %s50, %s66
      %p68 = scmp.eq.s32.totalorder %s28, 0
      %p69 = por %p67, %p68
      %s70 = ssub.s32 %s29, %s41
      %p71 = scmp.eq.s32.totalorder %s70, 0
      %s73 = sadd.s32 %s72, 1
      %s74 = scalar_select %p71, %s72, %s73
      %p77 = pneg %p71
      %p78 = scmp.eq.s32.totalorder %s22, 1
      %p79 = por %p77, %p78
      %p80 = scmp.ne.s32.totalorder %s72, %s75
      %p81 = scmp.eq.s32.totalorder %s22, 0
      %p82 = por %p80, %p81
      %p83 = scmp.ne.s32.totalorder %s72, %s75
      %p84 = scmp.eq.s32.totalorder %s27, 1
      %p85 = por %p83, %p84
      %p86 = scmp.ne.s32.totalorder %s75, %s76
      %p87 = scmp.eq.s32.totalorder %s27, 0
      %p88 = por %p86, %p87
      %p89 = scmp.ne.s32.totalorder %s75, %s76
      %p90 = scmp.eq.s32.totalorder %s28, 1
      %p91 = por %p89, %p90
      %p93 = scmp.ne.s32.totalorder %s76, %s92
      %p94 = scmp.eq.s32.totalorder %s28, 0
      %p95 = por %p93, %p94
      %s97 = sadd.s32 %s96, 1
      %p100 = scmp.eq.s32.totalorder %s22, 1
      %p101 = scmp.ne.s32.totalorder %s96, %s98
      %p102 = scmp.eq.s32.totalorder %s22, 0
      %p103 = por %p101, %p102
      %p104 = scmp.ne.s32.totalorder %s96, %s98
      %p105 = scmp.eq.s32.totalorder %s27, 1
      %p106 = por %p104, %p105
      %p107 = scmp.ne.s32.totalorder %s98, %s99
      %p108 = scmp.eq.s32.totalorder %s27, 0
      %p109 = por %p107, %p108
      %p110 = scmp.ne.s32.totalorder %s98, %s99
      %p111 = scmp.eq.s32.totalorder %s28, 1
      %p112 = por %p110, %p111
      %p114 = scmp.ne.s32.totalorder %s99, %s113
      %p115 = scmp.eq.s32.totalorder %s28, 0
      %p116 = por %p114, %p115
      %s118 = sadd.s32 %s117, 1
      %p121 = scmp.eq.s32.totalorder %s22, 1
      %p122 = scmp.ne.s32.totalorder %s117, %s119
      %p123 = scmp.eq.s32.totalorder %s22, 0
      %p124 = por %p122, %p123
      %p125 = scmp.ne.s32.totalorder %s117, %s119
      %p126 = scmp.eq.s32.totalorder %s27, 1
      %p127 = por %p125, %p126
      %p128 = scmp.ne.s32.totalorder %s119, %s120
      %p129 = scmp.eq.s32.totalorder %s27, 0
      %p130 = por %p128, %p129
      %p131 = scmp.ne.s32.totalorder %s119, %s120
      %p132 = scmp.eq.s32.totalorder %s28, 1
      %p133 = por %p131, %p132
      %p135 = scmp.ne.s32.totalorder %s120, %s134
      %p136 = scmp.eq.s32.totalorder %s28, 0
      %p137 = por %p135, %p136
      %s139 = sadd.s32 %s138, 1
      %p142 = scmp.eq.s32.totalorder %s22, 1
      %p143 = scmp.ne.s32.totalorder %s138, %s140
      %p144 = scmp.eq.s32.totalorder %s22, 0
      %p145 = por %p143, %p144
      %p146 = scmp.ne.s32.totalorder %s138, %s140
      %p147 = scmp.eq.s32.totalorder %s27, 1
      %p148 = por %p146, %p147
      %p149 = scmp.ne.s32.totalorder %s140, %s141
      %p150 = scmp.eq.s32.totalorder %s27, 0
      %p151 = por %p149, %p150
      %p152 = scmp.ne.s32.totalorder %s140, %s141
      %p153 = scmp.eq.s32.totalorder %s28, 1
      %p154 = por %p152, %p153
      %p156 = scmp.ne.s32.totalorder %s141, %s155
      %p157 = scmp.eq.s32.totalorder %s28, 0
      %p158 = por %p156, %p157
      %s160 = sadd.s32 %s159, 1
      %p163 = scmp.eq.s32.totalorder %s22, 1
      %p164 = scmp.ne.s32.totalorder %s159, %s161
      %p165 = scmp.eq.s32.totalorder %s22, 0
      %p166 = por %p164, %p165
      %p167 = scmp.ne.s32.totalorder %s159, %s161
      %p168 = scmp.eq.s32.totalorder %s27, 1
      %p169 = por %p167, %p168
      %p170 = scmp.ne.s32.totalorder %s161, %s162
      %p171 = scmp.eq.s32.totalorder %s27, 0
      %p172 = por %p170, %p171
      %p173 = scmp.ne.s32.totalorder %s161, %s162
      %p174 = scmp.eq.s32.totalorder %s28, 1
      %p175 = por %p173, %p174
      %p177 = scmp.ne.s32.totalorder %s162, %s176
      %p178 = scmp.eq.s32.totalorder %s28, 0
      %p179 = por %p177, %p178
      %s180 = ssub.s32 %s29, %s41
      %s181 = ssub.s32 %s30, %s37
      %s182 = sor.u32 %s180, %s181
      %p183 = scmp.eq.s32.totalorder %s182, 0
      %s185 = sadd.s32 %s184, 1
      %s186 = scalar_select %p183, %s184, %s185
      %p189 = pneg %p183
      %p190 = scmp.eq.s32.totalorder %s22, 1
      %p191 = por %p189, %p190
      %p192 = scmp.ne.s32.totalorder %s184, %s187
      %p193 = scmp.eq.s32.totalorder %s22, 0
      %p194 = por %p192, %p193
      %p195 = scmp.ne.s32.totalorder %s184, %s187
      %p196 = scmp.eq.s32.totalorder %s27, 1
      %p197 = por %p195, %p196
      %p198 = scmp.ne.s32.totalorder %s187, %s188
      %p199 = scmp.eq.s32.totalorder %s27, 0
      %p200 = por %p198, %p199
      %p201 = scmp.ne.s32.totalorder %s187, %s188
      %p202 = scmp.eq.s32.totalorder %s28, 1
      %p203 = por %p201, %p202
      %p205 = scmp.ne.s32.totalorder %s188, %s204
      %p206 = scmp.eq.s32.totalorder %s28, 0
      %p207 = por %p205, %p206
      %p208 = scmp.le.s32.totalorder 1, %s22
      %p209 = scmp.lt.s32.totalorder %s22, 3
      %p210 = pnand %p208, %p209
      %p211 = pneg %p210
      // Predicated region
      $region9: #{tpu_custom_call.1} parent=5 // pred_check
        _
      $region10: #{tpu_custom_call.1} parent=5 // pred_check_branch
        %213 = sbr.rel (%p210) target = $region12
      $region11: #{tpu_custom_call.1} parent=5 // pred_region
        %s214 = ssub.s32 %s22, 1
        // Predicated region
        $region13: #{tpu_custom_call.1} parent=11 // pred_check
          %p215 = pneg %p109
        $region14: #{tpu_custom_call.1} parent=11 // pred_check_branch
          %217 = sbr.rel (%p215) target = $region16
        $region15: #{tpu_custom_call.1} parent=11 // pred_region
          %s219 = ssub.s32 256, 256
          %220 = vsyncadd [#allocation6], %s219
          %s221 = sshll.u32 [#allocation7], 4
          %s222 = int_to_ptr.vmem [resolvable:$true] %s221
          %227 = dma.hbm_to_vmem [thread:$0]  %s2, 256, %s222, [#allocation6], 128, 128, 8
        $region16: #{tpu_custom_call.1} parent=11 // pred_fallthru
          _
        // Predicated region
        $region17: #{tpu_custom_call.1} parent=11 // pred_check
          %p228 = pneg %p130
        $region18: #{tpu_custom_call.1} parent=11 // pred_check_branch
          %230 = sbr.rel (%p228) target = $region20
        $region19: #{tpu_custom_call.1} parent=11 // pred_region
          %s232 = ssub.s32 256, 256
          %233 = vsyncadd [#allocation9], %s232
          %s234 = sshll.u32 [#allocation8], 4
          %s235 = int_to_ptr.vmem [resolvable:$true] %s234
          %240 = dma.hbm_to_vmem [thread:$0]  %s3, 256, %s235, [#allocation9], 128, 128, 8
        $region20: #{tpu_custom_call.1} parent=11 // pred_fallthru
          _
        // Predicated region
        $region21: #{tpu_custom_call.1} parent=11 // pred_check
          %p241 = pneg %p151
        $region22: #{tpu_custom_call.1} parent=11 // pred_check_branch
          %243 = sbr.rel (%p241) target = $region24
        $region23: #{tpu_custom_call.1} parent=11 // pred_region
          %s245 = ssub.s32 1024, 1024
          %246 = vsyncadd [#allocation9], %s245
          %s247 = sshll.u32 [#allocation10], 4
          %s248 = int_to_ptr.vmem [resolvable:$true] %s247
          %253 = dma.hbm_to_vmem [thread:$0]  %s4, 1024, %s248, [#allocation9], 128, 128, 8
        $region24: #{tpu_custom_call.1} parent=11 // pred_fallthru
          _
        // Predicated region
        $region25: #{tpu_custom_call.1} parent=11 // pred_check
          %p254 = pneg %p172
        $region26: #{tpu_custom_call.1} parent=11 // pred_check_branch
          %256 = sbr.rel (%p254) target = $region28
        $region27: #{tpu_custom_call.1} parent=11 // pred_region
          _
        $region28: #{tpu_custom_call.1} parent=11 // pred_fallthru
          _
      $region12: #{tpu_custom_call.1} parent=5 // pred_fallthru
        _
      %p257 = scmp.lt.s32.totalorder %s22, 2
      // Predicated region
      $region29: #{tpu_custom_call.1} parent=5 // pred_check
        %p258 = pneg %p257
      $region30: #{tpu_custom_call.1} parent=5 // pred_check_branch
        %260 = sbr.rel (%p258) target = $region32
      $region31: #{tpu_custom_call.1} parent=5 // pred_region
        // Predicated region
        $region33: #{tpu_custom_call.1} parent=31 // pred_check
          %p261 = pneg %p56
        $region34: #{tpu_custom_call.1} parent=31 // pred_check_branch
          %263 = sbr.rel (%p261) target = $region36
        $region35: #{tpu_custom_call.1} parent=31 // pred_region
          %s264 = sand.u32 %s46, 1
          %s265 = scalar_lea.sflag [#allocation3], %s264
          %s266 = sand.u32 %s46, 1
          %s267 = smul.addr %s266, 8
          %s268 = scalar_lea.vmem [#allocation2], %s267
          %s270 = ssub.s32 128, 128
          %271 = vsyncadd %s265, %s270
          %s272 = sadd.s32 %s30, %s29
          %s273 = smul.addr %s272, 128
          %s274 = scalar_lea.hbm %s0, %s273
          %s276 = sshll.u32 %s268, 4
          %s277 = int_to_ptr.vmem [resolvable:$true] %s276
          %279 = dma.hbm_to_vmem [thread:$0]  %s274, 128, %s277, %s265
        $region36: #{tpu_custom_call.1} parent=31 // pred_fallthru
          _
        // Predicated region
        $region37: #{tpu_custom_call.1} parent=31 // pred_check
          %p280 = pneg %p82
        $region38: #{tpu_custom_call.1} parent=31 // pred_check_branch
          %282 = sbr.rel (%p280) target = $region40
        $region39: #{tpu_custom_call.1} parent=31 // pred_region
          %s283 = sand.u32 %s22, 1
          %s284 = scalar_lea.sflag [#allocation6], %s283
          %s285 = sand.u32 %s72, 1
          %s286 = smul.addr %s285, 8
          %s287 = scalar_lea.vmem [#allocation5], %s286
          %s289 = ssub.s32 128, 128
          %290 = vsyncadd %s284, %s289
          %s291 = smul.addr %s29, 128
          %s292 = scalar_lea.hbm %s1, %s291
          %s294 = sshll.u32 %s287, 4
          %s295 = int_to_ptr.vmem [resolvable:$true] %s294
          %297 = dma.hbm_to_vmem [thread:$0]  %s292, 128, %s295, %s284
        $region40: #{tpu_custom_call.1} parent=31 // pred_fallthru
          _
      $region32: #{tpu_custom_call.1} parent=5 // pred_fallthru
        _
      %p298 = scmp.le.s32.totalorder 1, %s22
      %p299 = scmp.lt.s32.totalorder %s22, 3
      %p300 = pnand %p298, %p299
      %p301 = pneg %p300
      // Predicated region
      $region41: #{tpu_custom_call.1} parent=5 // pred_check
        _
      $region42: #{tpu_custom_call.1} parent=5 // pred_check_branch
        %303 = sbr.rel (%p300) target = $region44
      $region43: #{tpu_custom_call.1} parent=5 // pred_region
        %s304 = ssub.s32 %s22, 1
        %s305 = sand.u32 %s49, 1
        %s306 = scalar_lea.sflag [#allocation3], %s305
        %s307 = sand.u32 %s49, 1
        %s308 = smul.addr %s307, 8
        %s309 = scalar_lea.vmem [#allocation2], %s308
        // Predicated region
        $region45: #{tpu_custom_call.1} parent=43 // pred_check
          %p310 = pneg %p62
        $region46: #{tpu_custom_call.1} parent=43 // pred_check_branch
          %312 = sbr.rel (%p310) target = $region48
        $region47: #{tpu_custom_call.1} parent=43 // pred_region
          %313 = dma.done %s306, 128
        $region48: #{tpu_custom_call.1} parent=43 // pred_fallthru
          _
        %s314 = sand.u32 %s27, 1
        %s315 = scalar_lea.sflag [#allocation6], %s314
        %s316 = sand.u32 %s75, 1
        %s317 = smul.addr %s316, 8
        %s318 = scalar_lea.vmem [#allocation5], %s317
        // Predicated region
        $region49: #{tpu_custom_call.1} parent=43 // pred_check
          %p319 = pneg %p88
        $region50: #{tpu_custom_call.1} parent=43 // pred_check_branch
          %321 = sbr.rel (%p319) target = $region52
        $region51: #{tpu_custom_call.1} parent=43 // pred_region
          %322 = dma.done %s315, 128
        $region52: #{tpu_custom_call.1} parent=43 // pred_fallthru
          _
        // Predicated region
        $region53: #{tpu_custom_call.1} parent=43 // pred_check
          %p323 = pneg %p109
        $region54: #{tpu_custom_call.1} parent=43 // pred_check_branch
          %325 = sbr.rel (%p323) target = $region56
        $region55: #{tpu_custom_call.1} parent=43 // pred_region
          %326 = dma.done [#allocation6], 256
        $region56: #{tpu_custom_call.1} parent=43 // pred_fallthru
          _
        // Predicated region
        $region57: #{tpu_custom_call.1} parent=43 // pred_check
          %p327 = pneg %p130
        $region58: #{tpu_custom_call.1} parent=43 // pred_check_branch
          %329 = sbr.rel (%p327) target = $region60
        $region59: #{tpu_custom_call.1} parent=43 // pred_region
          %330 = dma.done [#allocation9], 256
        $region60: #{tpu_custom_call.1} parent=43 // pred_fallthru
          _
        // Predicated region
        $region61: #{tpu_custom_call.1} parent=43 // pred_check
          %p331 = pneg %p151
        $region62: #{tpu_custom_call.1} parent=43 // pred_check_branch
          %333 = sbr.rel (%p331) target = $region64
        $region63: #{tpu_custom_call.1} parent=43 // pred_region
          %334 = dma.done [#allocation9], 1024
        $region64: #{tpu_custom_call.1} parent=43 // pred_fallthru
          _
        %s335 = sand.u32 %s49, 1
        %s336 = scalar_lea.sflag [#allocation3], %s335
        %s337 = sand.u32 %s49, 1
        %s338 = smul.addr %s337, 8
        %s339 = scalar_lea.vmem [#allocation2], %s338
        %p340 = pneg %p62
        %p341 = pneg %p59
        %s342 = sand.u32 %s27, 1
        %s343 = scalar_lea.sflag [#allocation6], %s342
        %s344 = sand.u32 %s75, 1
        %s345 = smul.addr %s344, 8
        %s346 = scalar_lea.vmem [#allocation5], %s345
        %p347 = pneg %p88
        %p348 = pneg %p85
        %p349 = pneg %p109
        %p350 = pneg %p106
        %p351 = pneg %p130
        %p352 = pneg %p127
        %p353 = pneg %p151
        %p354 = pneg %p148
        %p355 = pneg %p172
        %p356 = pneg %p169
        %p357 = pneg %p200
        %p358 = pneg %p197
        %s359 = sand.u32 %s187, 1
        %s360 = scalar_lea.sflag [#allocation4], %s359
        %s361 = sand.u32 %s187, 1
        %s362 = smul.addr %s361, 8
        %s363 = scalar_lea.vmem [#allocation11], %s362
        %v364 = vld [vmem:[%s309] sm:$0xff]
        %v365 = vld [vmem:[%s318] sm:$0xff]
        %v366 = vld [vmem:[#allocation7] sm:$0xff]
        %v367 = vld [vmem:[#allocation7 + $0x8] sm:$0xff]
        %vm368 = vcmask 130048
        %v370 = vsel %vm368, %v364, 0
        %372 = vmatprep.subr.mxu0 0.0
        %373 = vmatpush1.msra.mxu0 %v366
        %374 = vmatprep.subr.mxu0 0.0
        %375 = vmatpush1.msra.mxu0 %v367
        %376 = vmatprep.subr.mxu0 0.0
        %377 = vmatpush1.msra.mxu0 0.0
        %378 = vmatprep.subr.mxu0 0.0
        %379 = vmatpush1.msra.mxu0 0.0
        %380 = vmatprep.subr.mxu0 0.0
        %381 = vmatpush1.msra.mxu0 0.0
        %382 = vmatprep.subr.mxu0 0.0
        %383 = vmatpush1.msra.mxu0 0.0
        %384 = vmatprep.subr.mxu0 0.0
        %385 = vmatpush1.msra.mxu0 0.0
        %386 = vmatprep.subr.mxu0 0.0
        %387 = vmatpush1.msra.mxu0 0.0
        %388 = vmatprep.subr.mxu0 0.0
        %389 = vmatpush1.msra.mxu0 0.0
        %390 = vmatprep.subr.mxu0 0.0
        %391 = vmatpush1.msra.mxu0 0.0
        %392 = vmatprep.subr.mxu0 0.0
        %393 = vmatpush1.msra.mxu0 0.0
        %394 = vmatprep.subr.mxu0 0.0
        %395 = vmatpush1.msra.mxu0 0.0
        %396 = vmatprep.subr.mxu0 0.0
        %397 = vmatpush1.msra.mxu0 0.0
        %398 = vmatprep.subr.mxu0 0.0
        %399 = vmatpush1.msra.mxu0 0.0
        %400 = vmatprep.subr.mxu0 0.0
        %401 = vmatpush1.msra.mxu0 0.0
        %402 = vmatprep.subr.mxu0 0.0
        %403 = vmatpush1.msra.mxu0 0.0
        %404 = vmatprep.subr.mxu0 0.0
        %405 = vmatpush1.msra.mxu0 0.0
        %406 = vmatprep.subr.mxu0 0.0
        %407 = vmatpush1.msra.mxu0 0.0
        %408 = vmatprep.subr.mxu0 0.0
        %409 = vmatpush1.msra.mxu0 0.0
        %410 = vmatprep.subr.mxu0 0.0
        %411 = vmatpush1.msra.mxu0 0.0
        %412 = vmatprep.subr.mxu0 0.0
        %413 = vmatpush1.msra.mxu0 0.0
        %414 = vmatprep.subr.mxu0 0.0
        %415 = vmatpush1.msra.mxu0 0.0
        %416 = vmatprep.subr.mxu0 0.0
        %417 = vmatpush1.msra.mxu0 0.0
        %418 = vmatprep.subr.mxu0 0.0
        %419 = vmatpush1.msra.mxu0 0.0
        %420 = vmatprep.subr.mxu0 0.0
        %421 = vmatpush1.msra.mxu0 0.0
        %422 = vmatprep.subr.mxu0 0.0
        %423 = vmatpush1.msra.mxu0 0.0
        %424 = vmatprep.subr.mxu0 0.0
        %425 = vmatpush1.msra.mxu0 0.0
        %426 = vmatprep.subr.mxu0 0.0
        %427 = vmatpush1.msra.mxu0 0.0
        %428 = vmatprep.subr.mxu0 0.0
        %429 = vmatpush1.msra.mxu0 0.0
        %430 = vmatprep.subr.mxu0 0.0
        %431 = vmatpush1.msra.mxu0 0.0
        %432 = vmatprep.subr.mxu0 0.0
        %433 = vmatpush1.msra.mxu0 0.0
        %434 = vmatprep.subr.mxu0 0.0
        %435 = vmatpush1.msra.mxu0 0.0
        %436 = vmatprep.mubr.f32.mxu0 0.0
        %437 = vmatmul.mubr.f32.gmra.mrb[0].mxu0 %v370
        %v438 = vpop.f32.mrb[0].mxu0
        %v439 = vadd.f32 0.0, %v438
        %v440 = vpop.f32.mrb[0].mxu0
        %441 = vdwg.mxu0
        %v442 = vld [vmem:[#allocation8] sm:$0xff]
        %v443 = vld [vmem:[#allocation8 + $0x8] sm:$0xff]
        %v445 = vsel %vm368, %v365, 0
        %447 = vmatprep.subr.mxu0 0.0
        %448 = vmatpush1.msra.mxu0 %v442
        %449 = vmatprep.subr.mxu0 0.0
        %450 = vmatpush1.msra.mxu0 %v443
        %451 = vmatprep.subr.mxu0 0.0
        %452 = vmatpush1.msra.mxu0 0.0
        %453 = vmatprep.subr.mxu0 0.0
        %454 = vmatpush1.msra.mxu0 0.0
        %455 = vmatprep.subr.mxu0 0.0
        %456 = vmatpush1.msra.mxu0 0.0
        %457 = vmatprep.subr.mxu0 0.0
        %458 = vmatpush1.msra.mxu0 0.0
        %459 = vmatprep.subr.mxu0 0.0
        %460 = vmatpush1.msra.mxu0 0.0
        %461 = vmatprep.subr.mxu0 0.0
        %462 = vmatpush1.msra.mxu0 0.0
        %463 = vmatprep.subr.mxu0 0.0
        %464 = vmatpush1.msra.mxu0 0.0
        %465 = vmatprep.subr.mxu0 0.0
        %466 = vmatpush1.msra.mxu0 0.0
        %467 = vmatprep.subr.mxu0 0.0
        %468 = vmatpush1.msra.mxu0 0.0
        %469 = vmatprep.subr.mxu0 0.0
        %470 = vmatpush1.msra.mxu0 0.0
        %471 = vmatprep.subr.mxu0 0.0
        %472 = vmatpush1.msra.mxu0 0.0
        %473 = vmatprep.subr.mxu0 0.0
        %474 = vmatpush1.msra.mxu0 0.0
        %475 = vmatprep.subr.mxu0 0.0
        %476 = vmatpush1.msra.mxu0 0.0
        %477 = vmatprep.subr.mxu0 0.0
        %478 = vmatpush1.msra.mxu0 0.0
        %479 = vmatprep.subr.mxu0 0.0
        %480 = vmatpush1.msra.mxu0 0.0
        %481 = vmatprep.subr.mxu0 0.0
        %482 = vmatpush1.msra.mxu0 0.0
        %483 = vmatprep.subr.mxu0 0.0
        %484 = vmatpush1.msra.mxu0 0.0
        %485 = vmatprep.subr.mxu0 0.0
        %486 = vmatpush1.msra.mxu0 0.0
        %487 = vmatprep.subr.mxu0 0.0
        %488 = vmatpush1.msra.mxu0 0.0
        %489 = vmatprep.subr.mxu0 0.0
        %490 = vmatpush1.msra.mxu0 0.0
        %491 = vmatprep.subr.mxu0 0.0
        %492 = vmatpush1.msra.mxu0 0.0
        %493 = vmatprep.subr.mxu0 0.0
        %494 = vmatpush1.msra.mxu0 0.0
        %495 = vmatprep.subr.mxu0 0.0
        %496 = vmatpush1.msra.mxu0 0.0
        %497 = vmatprep.subr.mxu0 0.0
        %498 = vmatpush1.msra.mxu0 0.0
        %499 = vmatprep.subr.mxu0 0.0
        %500 = vmatpush1.msra.mxu0 0.0
        %501 = vmatprep.subr.mxu0 0.0
        %502 = vmatpush1.msra.mxu0 0.0
        %503 = vmatprep.subr.mxu0 0.0
        %504 = vmatpush1.msra.mxu0 0.0
        %505 = vmatprep.subr.mxu0 0.0
        %506 = vmatpush1.msra.mxu0 0.0
        %507 = vmatprep.subr.mxu0 0.0
        %508 = vmatpush1.msra.mxu0 0.0
        %509 = vmatprep.subr.mxu0 0.0
        %510 = vmatpush1.msra.mxu0 0.0
        %511 = vmatprep.mubr.f32.mxu0 0.0
        %512 = vmatmul.mubr.f32.gmra.mrb[0].mxu0 %v445
        %v513 = vpop.f32.mrb[0].mxu0
        %v514 = vadd.f32 0.0, %v513
        %v515 = vpop.f32.mrb[0].mxu0
        %516 = vdwg.mxu0
        %v517 = vmul.f32 %v439, 0.25
        %s518 = smul.u32 %s32, 8
        %v519 = vlaneseq
        %v520 = vshrl.u32 %v519, 7
        %v521 = vstv %s518
        %v522 = vadd.s32 %v521, %v520
        %v523 = vlaneseq
        %v524 = vand.u32 %v523, 127
        %vm525 = vcmp.le.s32.totalorder %v524, %v522
        %v527 = vsel %vm368, %v517, 0
        %v530 = vsel %vm368, %v514, 0
        %532 = vmatprep.subr.mxu0 0.0
        %533 = vmatpush1.xpose.msra.mxu0 %v530
        %534 = vmatprep.subr.mxu0 0.0
        %535 = vmatpush1.xpose.msra.mxu0 0.0
        %536 = vmatprep.subr.mxu0 0.0
        %537 = vmatpush1.xpose.msra.mxu0 0.0
        %538 = vmatprep.subr.mxu0 0.0
        %539 = vmatpush1.xpose.msra.mxu0 0.0
        %540 = vmatprep.subr.mxu0 0.0
        %541 = vmatpush1.xpose.msra.mxu0 0.0
        %542 = vmatprep.subr.mxu0 0.0
        %543 = vmatpush1.xpose.msra.mxu0 0.0
        %544 = vmatprep.subr.mxu0 0.0
        %545 = vmatpush1.xpose.msra.mxu0 0.0
        %546 = vmatprep.subr.mxu0 0.0
        %547 = vmatpush1.xpose.msra.mxu0 0.0
        %548 = vmatprep.subr.mxu0 0.0
        %549 = vmatpush1.xpose.msra.mxu0 0.0
        %550 = vmatprep.subr.mxu0 0.0
        %551 = vmatpush1.xpose.msra.mxu0 0.0
        %552 = vmatprep.subr.mxu0 0.0
        %553 = vmatpush1.xpose.msra.mxu0 0.0
        %554 = vmatprep.subr.mxu0 0.0
        %555 = vmatpush1.xpose.msra.mxu0 0.0
        %556 = vmatprep.subr.mxu0 0.0
        %557 = vmatpush1.xpose.msra.mxu0 0.0
        %558 = vmatprep.subr.mxu0 0.0
        %559 = vmatpush1.xpose.msra.mxu0 0.0
        %560 = vmatprep.subr.mxu0 0.0
        %561 = vmatpush1.xpose.msra.mxu0 0.0
        %562 = vmatprep.subr.mxu0 0.0
        %563 = vmatpush1.xpose.msra.mxu0 0.0
        %564 = vmatprep.subr.mxu0 0.0
        %565 = vmatpush1.xpose.msra.mxu0 0.0
        %566 = vmatprep.subr.mxu0 0.0
        %567 = vmatpush1.xpose.msra.mxu0 0.0
        %568 = vmatprep.subr.mxu0 0.0
        %569 = vmatpush1.xpose.msra.mxu0 0.0
        %570 = vmatprep.subr.mxu0 0.0
        %571 = vmatpush1.xpose.msra.mxu0 0.0
        %572 = vmatprep.subr.mxu0 0.0
        %573 = vmatpush1.xpose.msra.mxu0 0.0
        %574 = vmatprep.subr.mxu0 0.0
        %575 = vmatpush1.xpose.msra.mxu0 0.0
        %576 = vmatprep.subr.mxu0 0.0
        %577 = vmatpush1.xpose.msra.mxu0 0.0
        %578 = vmatprep.subr.mxu0 0.0
        %579 = vmatpush1.xpose.msra.mxu0 0.0
        %580 = vmatprep.subr.mxu0 0.0
        %581 = vmatpush1.xpose.msra.mxu0 0.0
        %582 = vmatprep.subr.mxu0 0.0
        %583 = vmatpush1.xpose.msra.mxu0 0.0
        %584 = vmatprep.subr.mxu0 0.0
        %585 = vmatpush1.xpose.msra.mxu0 0.0
        %586 = vmatprep.subr.mxu0 0.0
        %587 = vmatpush1.xpose.msra.mxu0 0.0
        %588 = vmatprep.subr.mxu0 0.0
        %589 = vmatpush1.xpose.msra.mxu0 0.0
        %590 = vmatprep.subr.mxu0 0.0
        %591 = vmatpush1.xpose.msra.mxu0 0.0
        %592 = vmatprep.subr.mxu0 0.0
        %593 = vmatpush1.xpose.msra.mxu0 0.0
        %594 = vmatprep.subr.mxu0 0.0
        %595 = vmatpush1.xpose.msra.mxu0 0.0
        %596 = vmatprep.mubr.f32.mxu0 0.0
        %597 = vmatmul.mubr.f32.gmra.mrb[0].mxu0 %v527
        %v598 = vpop.f32.mrb[0].mxu0
        %v599 = vadd.f32 0.0, %v598
        %v600 = vpop.f32.mrb[0].mxu0
        %601 = vdwg.mxu0
        %v602 = vsel %vm525, %v599, -inf
        %vm603 = vcmask 64512
        %v604 = vsel %vm603, %v602, -inf
        %605 = vmax.xlane.f32.xlu0 %v604
        %v606 = vpop.xlane.xlu0 %605
        %v607 = vsub.f32 %v602, %v606
        %v608 = vmul.f32 %v607, 1.442695
        %v609 = vpow.pop %v608
        %v610 = vsel %vm603, %v609, 0.0
        %611 = vadd.xlane.f32.xlu0 %v610
        %v612 = vpop.xlane.xlu0 %611
        %v613 = vrcp.pop %v612
        %v614 = vmul.f32 %v609, %v613
        %615 = vrot.lane.b32.xlu0 %v514, 64
        %v616 = vpop.permute.xlu0 %615
        %v619 = vsel %vm603, %v614, 0
        %621 = vmatprep.subr.mxu0 0.0
        %622 = vmatpush1.msra.mxu0 %v616
        %623 = vmatprep.subr.mxu0 0.0
        %624 = vmatpush1.msra.mxu0 0.0
        %625 = vmatprep.subr.mxu0 0.0
        %626 = vmatpush1.msra.mxu0 0.0
        %627 = vmatprep.subr.mxu0 0.0
        %628 = vmatpush1.msra.mxu0 0.0
        %629 = vmatprep.subr.mxu0 0.0
        %630 = vmatpush1.msra.mxu0 0.0
        %631 = vmatprep.subr.mxu0 0.0
        %632 = vmatpush1.msra.mxu0 0.0
        %633 = vmatprep.subr.mxu0 0.0
        %634 = vmatpush1.msra.mxu0 0.0
        %635 = vmatprep.subr.mxu0 0.0
        %636 = vmatpush1.msra.mxu0 0.0
        %637 = vmatprep.subr.mxu0 0.0
        %638 = vmatpush1.msra.mxu0 0.0
        %639 = vmatprep.subr.mxu0 0.0
        %640 = vmatpush1.msra.mxu0 0.0
        %641 = vmatprep.subr.mxu0 0.0
        %642 = vmatpush1.msra.mxu0 0.0
        %643 = vmatprep.subr.mxu0 0.0
        %644 = vmatpush1.msra.mxu0 0.0
        %645 = vmatprep.subr.mxu0 0.0
        %646 = vmatpush1.msra.mxu0 0.0
        %647 = vmatprep.subr.mxu0 0.0
        %648 = vmatpush1.msra.mxu0 0.0
        %649 = vmatprep.subr.mxu0 0.0
        %650 = vmatpush1.msra.mxu0 0.0
        %651 = vmatprep.subr.mxu0 0.0
        %652 = vmatpush1.msra.mxu0 0.0
        %653 = vmatprep.subr.mxu0 0.0
        %654 = vmatpush1.msra.mxu0 0.0
        %655 = vmatprep.subr.mxu0 0.0
        %656 = vmatpush1.msra.mxu0 0.0
        %657 = vmatprep.subr.mxu0 0.0
        %658 = vmatpush1.msra.mxu0 0.0
        %659 = vmatprep.subr.mxu0 0.0
        %660 = vmatpush1.msra.mxu0 0.0
        %661 = vmatprep.subr.mxu0 0.0
        %662 = vmatpush1.msra.mxu0 0.0
        %663 = vmatprep.subr.mxu0 0.0
        %664 = vmatpush1.msra.mxu0 0.0
        %665 = vmatprep.subr.mxu0 0.0
        %666 = vmatpush1.msra.mxu0 0.0
        %667 = vmatprep.subr.mxu0 0.0
        %668 = vmatpush1.msra.mxu0 0.0
        %669 = vmatprep.subr.mxu0 0.0
        %670 = vmatpush1.msra.mxu0 0.0
        %671 = vmatprep.subr.mxu0 0.0
        %672 = vmatpush1.msra.mxu0 0.0
        %673 = vmatprep.subr.mxu0 0.0
        %674 = vmatpush1.msra.mxu0 0.0
        %675 = vmatprep.subr.mxu0 0.0
        %676 = vmatpush1.msra.mxu0 0.0
        %677 = vmatprep.subr.mxu0 0.0
        %678 = vmatpush1.msra.mxu0 0.0
        %679 = vmatprep.subr.mxu0 0.0
        %680 = vmatpush1.msra.mxu0 0.0
        %681 = vmatprep.subr.mxu0 0.0
        %682 = vmatpush1.msra.mxu0 0.0
        %683 = vmatprep.subr.mxu0 0.0
        %684 = vmatpush1.msra.mxu0 0.0
        %685 = vmatprep.mubr.f32.mxu0 0.0
        %686 = vmatmul.mubr.f32.gmra.mrb[0].mxu0 %v619
        %v687 = vpop.f32.mrb[0].mxu0
        %v688 = vadd.f32 0.0, %v687
        %v689 = vpop.f32.mrb[0].mxu0
        %690 = vdwg.mxu0
        %691 = vrot.lane.b32.xlu0 %v517, 112
        %v692 = vpop.permute.xlu0 %691
        %693 = vrot.lane.b32.xlu0 %v514, 112
        %v694 = vpop.permute.xlu0 %693
        %v695 = vsel %vm368, %v692, 0
        %v697 = vsel %vm368, %v694, 0
        %699 = vmatprep.subr.mxu0 0.0
        %700 = vmatpush1.xpose.msra.mxu0 %v697
        %701 = vmatprep.subr.mxu0 0.0
        %702 = vmatpush1.xpose.msra.mxu0 0.0
        %703 = vmatprep.subr.mxu0 0.0
        %704 = vmatpush1.xpose.msra.mxu0 0.0
        %705 = vmatprep.subr.mxu0 0.0
        %706 = vmatpush1.xpose.msra.mxu0 0.0
        %707 = vmatprep.subr.mxu0 0.0
        %708 = vmatpush1.xpose.msra.mxu0 0.0
        %709 = vmatprep.subr.mxu0 0.0
        %710 = vmatpush1.xpose.msra.mxu0 0.0
        %711 = vmatprep.subr.mxu0 0.0
        %712 = vmatpush1.xpose.msra.mxu0 0.0
        %713 = vmatprep.subr.mxu0 0.0
        %714 = vmatpush1.xpose.msra.mxu0 0.0
        %715 = vmatprep.subr.mxu0 0.0
        %716 = vmatpush1.xpose.msra.mxu0 0.0
        %717 = vmatprep.subr.mxu0 0.0
        %718 = vmatpush1.xpose.msra.mxu0 0.0
        %719 = vmatprep.subr.mxu0 0.0
        %720 = vmatpush1.xpose.msra.mxu0 0.0
        %721 = vmatprep.subr.mxu0 0.0
        %722 = vmatpush1.xpose.msra.mxu0 0.0
        %723 = vmatprep.subr.mxu0 0.0
        %724 = vmatpush1.xpose.msra.mxu0 0.0
        %725 = vmatprep.subr.mxu0 0.0
        %726 = vmatpush1.xpose.msra.mxu0 0.0
        %727 = vmatprep.subr.mxu0 0.0
        %728 = vmatpush1.xpose.msra.mxu0 0.0
        %729 = vmatprep.subr.mxu0 0.0
        %730 = vmatpush1.xpose.msra.mxu0 0.0
        %731 = vmatprep.subr.mxu0 0.0
        %732 = vmatpush1.xpose.msra.mxu0 0.0
        %733 = vmatprep.subr.mxu0 0.0
        %734 = vmatpush1.xpose.msra.mxu0 0.0
        %735 = vmatprep.subr.mxu0 0.0
        %736 = vmatpush1.xpose.msra.mxu0 0.0
        %737 = vmatprep.subr.mxu0 0.0
        %738 = vmatpush1.xpose.msra.mxu0 0.0
        %739 = vmatprep.subr.mxu0 0.0
        %740 = vmatpush1.xpose.msra.mxu0 0.0
        %741 = vmatprep.subr.mxu0 0.0
        %742 = vmatpush1.xpose.msra.mxu0 0.0
        %743 = vmatprep.subr.mxu0 0.0
        %744 = vmatpush1.xpose.msra.mxu0 0.0
        %745 = vmatprep.subr.mxu0 0.0
        %746 = vmatpush1.xpose.msra.mxu0 0.0
        %747 = vmatprep.subr.mxu0 0.0
        %748 = vmatpush1.xpose.msra.mxu0 0.0
        %749 = vmatprep.subr.mxu0 0.0
        %750 = vmatpush1.xpose.msra.mxu0 0.0
        %751 = vmatprep.subr.mxu0 0.0
        %752 = vmatpush1.xpose.msra.mxu0 0.0
        %753 = vmatprep.subr.mxu0 0.0
        %754 = vmatpush1.xpose.msra.mxu0 0.0
        %755 = vmatprep.subr.mxu0 0.0
        %756 = vmatpush1.xpose.msra.mxu0 0.0
        %757 = vmatprep.subr.mxu0 0.0
        %758 = vmatpush1.xpose.msra.mxu0 0.0
        %759 = vmatprep.subr.mxu0 0.0
        %760 = vmatpush1.xpose.msra.mxu0 0.0
        %761 = vmatprep.subr.mxu0 0.0
        %762 = vmatpush1.xpose.msra.mxu0 0.0
        %763 = vmatprep.mubr.f32.mxu0 0.0
        %764 = vmatmul.mubr.f32.gmra.mrb[0].mxu0 %v695
        %v765 = vpop.f32.mrb[0].mxu0
        %v766 = vadd.f32 0.0, %v765
        %v767 = vpop.f32.mrb[0].mxu0
        %768 = vdwg.mxu0
        %v769 = vsel %vm525, %v766, -inf
        %v770 = vsel %vm603, %v769, -inf
        %771 = vmax.xlane.f32.xlu0 %v770
        %v772 = vpop.xlane.xlu0 %771
        %v773 = vsub.f32 %v769, %v772
        %v774 = vmul.f32 %v773, 1.442695
        %v775 = vpow.pop %v774
        %v776 = vsel %vm603, %v775, 0.0
        %777 = vadd.xlane.f32.xlu0 %v776
        %v778 = vpop.xlane.xlu0 %777
        %v779 = vrcp.pop %v778
        %v780 = vmul.f32 %v775, %v779
        %781 = vrot.lane.b32.xlu0 %v514, 48
        %v782 = vpop.permute.xlu0 %781
        %v785 = vsel %vm603, %v780, 0
        %787 = vmatprep.subr.mxu0 0.0
        %788 = vmatpush1.msra.mxu0 %v782
        %789 = vmatprep.subr.mxu0 0.0
        %790 = vmatpush1.msra.mxu0 0.0
        %791 = vmatprep.subr.mxu0 0.0
        %792 = vmatpush1.msra.mxu0 0.0
        %793 = vmatprep.subr.mxu0 0.0
        %794 = vmatpush1.msra.mxu0 0.0
        %795 = vmatprep.subr.mxu0 0.0
        %796 = vmatpush1.msra.mxu0 0.0
        %797 = vmatprep.subr.mxu0 0.0
        %798 = vmatpush1.msra.mxu0 0.0
        %799 = vmatprep.subr.mxu0 0.0
        %800 = vmatpush1.msra.mxu0 0.0
        %801 = vmatprep.subr.mxu0 0.0
        %802 = vmatpush1.msra.mxu0 0.0
        %803 = vmatprep.subr.mxu0 0.0
        %804 = vmatpush1.msra.mxu0 0.0
        %805 = vmatprep.subr.mxu0 0.0
        %806 = vmatpush1.msra.mxu0 0.0
        %807 = vmatprep.subr.mxu0 0.0
        %808 = vmatpush1.msra.mxu0 0.0
        %809 = vmatprep.subr.mxu0 0.0
        %810 = vmatpush1.msra.mxu0 0.0
        %811 = vmatprep.subr.mxu0 0.0
        %812 = vmatpush1.msra.mxu0 0.0
        %813 = vmatprep.subr.mxu0 0.0
        %814 = vmatpush1.msra.mxu0 0.0
        %815 = vmatprep.subr.mxu0 0.0
        %816 = vmatpush1.msra.mxu0 0.0
        %817 = vmatprep.subr.mxu0 0.0
        %818 = vmatpush1.msra.mxu0 0.0
        %819 = vmatprep.subr.mxu0 0.0
        %820 = vmatpush1.msra.mxu0 0.0
        %821 = vmatprep.subr.mxu0 0.0
        %822 = vmatpush1.msra.mxu0 0.0
        %823 = vmatprep.subr.mxu0 0.0
        %824 = vmatpush1.msra.mxu0 0.0
        %825 = vmatprep.subr.mxu0 0.0
        %826 = vmatpush1.msra.mxu0 0.0
        %827 = vmatprep.subr.mxu0 0.0
        %828 = vmatpush1.msra.mxu0 0.0
        %829 = vmatprep.subr.mxu0 0.0
        %830 = vmatpush1.msra.mxu0 0.0
        %831 = vmatprep.subr.mxu0 0.0
        %832 = vmatpush1.msra.mxu0 0.0
        %833 = vmatprep.subr.mxu0 0.0
        %834 = vmatpush1.msra.mxu0 0.0
        %835 = vmatprep.subr.mxu0 0.0
        %836 = vmatpush1.msra.mxu0 0.0
        %837 = vmatprep.subr.mxu0 0.0
        %838 = vmatpush1.msra.mxu0 0.0
        %839 = vmatprep.subr.mxu0 0.0
        %840 = vmatpush1.msra.mxu0 0.0
        %841 = vmatprep.subr.mxu0 0.0
        %842 = vmatpush1.msra.mxu0 0.0
        %843 = vmatprep.subr.mxu0 0.0
        %844 = vmatpush1.msra.mxu0 0.0
        %845 = vmatprep.subr.mxu0 0.0
        %846 = vmatpush1.msra.mxu0 0.0
        %847 = vmatprep.subr.mxu0 0.0
        %848 = vmatpush1.msra.mxu0 0.0
        %849 = vmatprep.subr.mxu0 0.0
        %850 = vmatpush1.msra.mxu0 0.0
        %851 = vmatprep.mubr.f32.mxu0 0.0
        %852 = vmatmul.mubr.f32.gmra.mrb[0].mxu0 %v785
        %v853 = vpop.f32.mrb[0].mxu0
        %v854 = vadd.f32 0.0, %v853
        %v855 = vpop.f32.mrb[0].mxu0
        %856 = vdwg.mxu0
        %857 = vrot.lane.b32.xlu0 %v517, 96
        %v858 = vpop.permute.xlu0 %857
        %859 = vrot.lane.b32.xlu0 %v514, 96
        %v860 = vpop.permute.xlu0 %859
        %v861 = vsel %vm368, %v858, 0
        %v863 = vsel %vm368, %v860, 0
        %865 = vmatprep.subr.mxu0 0.0
        %866 = vmatpush1.xpose.msra.mxu0 %v863
        %867 = vmatprep.subr.mxu0 0.0
        %868 = vmatpush1.xpose.msra.mxu0 0.0
        %869 = vmatprep.subr.mxu0 0.0
        %870 = vmatpush1.xpose.msra.mxu0 0.0
        %871 = vmatprep.subr.mxu0 0.0
        %872 = vmatpush1.xpose.msra.mxu0 0.0
        %873 = vmatprep.subr.mxu0 0.0
        %874 = vmatpush1.xpose.msra.mxu0 0.0
        %875 = vmatprep.subr.mxu0 0.0
        %876 = vmatpush1.xpose.msra.mxu0 0.0
        %877 = vmatprep.subr.mxu0 0.0
        %878 = vmatpush1.xpose.msra.mxu0 0.0
        %879 = vmatprep.subr.mxu0 0.0
        %880 = vmatpush1.xpose.msra.mxu0 0.0
        %881 = vmatprep.subr.mxu0 0.0
        %882 = vmatpush1.xpose.msra.mxu0 0.0
        %883 = vmatprep.subr.mxu0 0.0
        %884 = vmatpush1.xpose.msra.mxu0 0.0
        %885 = vmatprep.subr.mxu0 0.0
        %886 = vmatpush1.xpose.msra.mxu0 0.0
        %887 = vmatprep.subr.mxu0 0.0
        %888 = vmatpush1.xpose.msra.mxu0 0.0
        %889 = vmatprep.subr.mxu0 0.0
        %890 = vmatpush1.xpose.msra.mxu0 0.0
        %891 = vmatprep.subr.mxu0 0.0
        %892 = vmatpush1.xpose.msra.mxu0 0.0
        %893 = vmatprep.subr.mxu0 0.0
        %894 = vmatpush1.xpose.msra.mxu0 0.0
        %895 = vmatprep.subr.mxu0 0.0
        %896 = vmatpush1.xpose.msra.mxu0 0.0
        %897 = vmatprep.subr.mxu0 0.0
        %898 = vmatpush1.xpose.msra.mxu0 0.0
        %899 = vmatprep.subr.mxu0 0.0
        %900 = vmatpush1.xpose.msra.mxu0 0.0
        %901 = vmatprep.subr.mxu0 0.0
        %902 = vmatpush1.xpose.msra.mxu0 0.0
        %903 = vmatprep.subr.mxu0 0.0
        %904 = vmatpush1.xpose.msra.mxu0 0.0
        %905 = vmatprep.subr.mxu0 0.0
        %906 = vmatpush1.xpose.msra.mxu0 0.0
        %907 = vmatprep.subr.mxu0 0.0
        %908 = vmatpush1.xpose.msra.mxu0 0.0
        %909 = vmatprep.subr.mxu0 0.0
        %910 = vmatpush1.xpose.msra.mxu0 0.0
        %911 = vmatprep.subr.mxu0 0.0
        %912 = vmatpush1.xpose.msra.mxu0 0.0
        %913 = vmatprep.subr.mxu0 0.0
        %914 = vmatpush1.xpose.msra.mxu0 0.0
        %915 = vmatprep.subr.mxu0 0.0
        %916 = vmatpush1.xpose.msra.mxu0 0.0
        %917 = vmatprep.subr.mxu0 0.0
        %918 = vmatpush1.xpose.msra.mxu0 0.0
        %919 = vmatprep.subr.mxu0 0.0
        %920 = vmatpush1.xpose.msra.mxu0 0.0
        %921 = vmatprep.subr.mxu0 0.0
        %922 = vmatpush1.xpose.msra.mxu0 0.0
        %923 = vmatprep.subr.mxu0 0.0
        %924 = vmatpush1.xpose.msra.mxu0 0.0
        %925 = vmatprep.subr.mxu0 0.0
        %926 = vmatpush1.xpose.msra.mxu0 0.0
        %927 = vmatprep.subr.mxu0 0.0
        %928 = vmatpush1.xpose.msra.mxu0 0.0
        %929 = vmatprep.mubr.f32.mxu0 0.0
        %930 = vmatmul.mubr.f32.gmra.mrb[0].mxu0 %v861
        %v931 = vpop.f32.mrb[0].mxu0
        %v932 = vadd.f32 0.0, %v931
        %v933 = vpop.f32.mrb[0].mxu0
        %934 = vdwg.mxu0
        %v935 = vsel %vm525, %v932, -inf
        %v936 = vsel %vm603, %v935, -inf
        %937 = vmax.xlane.f32.xlu0 %v936
        %v938 = vpop.xlane.xlu0 %937
        %v939 = vsub.f32 %v935, %v938
        %v940 = vmul.f32 %v939, 1.442695
        %v941 = vpow.pop %v940
        %v942 = vsel %vm603, %v941, 0.0
        %943 = vadd.xlane.f32.xlu0 %v942
        %v944 = vpop.xlane.xlu0 %943
        %v945 = vrcp.pop %v944
        %v946 = vmul.f32 %v941, %v945
        %947 = vrot.lane.b32.xlu0 %v514, 32
        %v948 = vpop.permute.xlu0 %947
        %v951 = vsel %vm603, %v946, 0
        %953 = vmatprep.subr.mxu0 0.0
        %954 = vmatpush1.msra.mxu0 %v948
        %955 = vmatprep.subr.mxu0 0.0
        %956 = vmatpush1.msra.mxu0 0.0
        %957 = vmatprep.subr.mxu0 0.0
        %958 = vmatpush1.msra.mxu0 0.0
        %959 = vmatprep.subr.mxu0 0.0
        %960 = vmatpush1.msra.mxu0 0.0
        %961 = vmatprep.subr.mxu0 0.0
        %962 = vmatpush1.msra.mxu0 0.0
        %963 = vmatprep.subr.mxu0 0.0
        %964 = vmatpush1.msra.mxu0 0.0
        %965 = vmatprep.subr.mxu0 0.0
        %966 = vmatpush1.msra.mxu0 0.0
        %967 = vmatprep.subr.mxu0 0.0
        %968 = vmatpush1.msra.mxu0 0.0
        %969 = vmatprep.subr.mxu0 0.0
        %970 = vmatpush1.msra.mxu0 0.0
        %971 = vmatprep.subr.mxu0 0.0
        %972 = vmatpush1.msra.mxu0 0.0
        %973 = vmatprep.subr.mxu0 0.0
        %974 = vmatpush1.msra.mxu0 0.0
        %975 = vmatprep.subr.mxu0 0.0
        %976 = vmatpush1.msra.mxu0 0.0
        %977 = vmatprep.subr.mxu0 0.0
        %978 = vmatpush1.msra.mxu0 0.0
        %979 = vmatprep.subr.mxu0 0.0
        %980 = vmatpush1.msra.mxu0 0.0
        %981 = vmatprep.subr.mxu0 0.0
        %982 = vmatpush1.msra.mxu0 0.0
        %983 = vmatprep.subr.mxu0 0.0
        %984 = vmatpush1.msra.mxu0 0.0
        %985 = vmatprep.subr.mxu0 0.0
        %986 = vmatpush1.msra.mxu0 0.0
        %987 = vmatprep.subr.mxu0 0.0
        %988 = vmatpush1.msra.mxu0 0.0
        %989 = vmatprep.subr.mxu0 0.0
        %990 = vmatpush1.msra.mxu0 0.0
        %991 = vmatprep.subr.mxu0 0.0
        %992 = vmatpush1.msra.mxu0 0.0
        %993 = vmatprep.subr.mxu0 0.0
        %994 = vmatpush1.msra.mxu0 0.0
        %995 = vmatprep.subr.mxu0 0.0
        %996 = vmatpush1.msra.mxu0 0.0
        %997 = vmatprep.subr.mxu0 0.0
        %998 = vmatpush1.msra.mxu0 0.0
        %999 = vmatprep.subr.mxu0 0.0
        %1000 = vmatpush1.msra.mxu0 0.0
        %1001 = vmatprep.subr.mxu0 0.0
        %1002 = vmatpush1.msra.mxu0 0.0
        %1003 = vmatprep.subr.mxu0 0.0
        %1004 = vmatpush1.msra.mxu0 0.0
        %1005 = vmatprep.subr.mxu0 0.0
        %1006 = vmatpush1.msra.mxu0 0.0
        %1007 = vmatprep.subr.mxu0 0.0
        %1008 = vmatpush1.msra.mxu0 0.0
        %1009 = vmatprep.subr.mxu0 0.0
        %1010 = vmatpush1.msra.mxu0 0.0
        %1011 = vmatprep.subr.mxu0 0.0
        %1012 = vmatpush1.msra.mxu0 0.0
        %1013 = vmatprep.subr.mxu0 0.0
        %1014 = vmatpush1.msra.mxu0 0.0
        %1015 = vmatprep.subr.mxu0 0.0
        %1016 = vmatpush1.msra.mxu0 0.0
        %1017 = vmatprep.mubr.f32.mxu0 0.0
        %1018 = vmatmul.mubr.f32.gmra.mrb[0].mxu0 %v951
        %v1019 = vpop.f32.mrb[0].mxu0
        %v1020 = vadd.f32 0.0, %v1019
        %v1021 = vpop.f32.mrb[0].mxu0
        %1022 = vdwg.mxu0
        %1023 = vrot.lane.b32.xlu0 %v517, 80
        %v1024 = vpop.permute.xlu0 %1023
        %1025 = vrot.lane.b32.xlu0 %v514, 80
        %v1026 = vpop.permute.xlu0 %1025
        %v1027 = vsel %vm368, %v1024, 0
        %v1029 = vsel %vm368, %v1026, 0
        %1031 = vmatprep.subr.mxu0 0.0
        %1032 = vmatpush1.xpose.msra.mxu0 %v1029
        %1033 = vmatprep.subr.mxu0 0.0
        %1034 = vmatpush1.xpose.msra.mxu0 0.0
        %1035 = vmatprep.subr.mxu0 0.0
        %1036 = vmatpush1.xpose.msra.mxu0 0.0
        %1037 = vmatprep.subr.mxu0 0.0
        %1038 = vmatpush1.xpose.msra.mxu0 0.0
        %1039 = vmatprep.subr.mxu0 0.0
        %1040 = vmatpush1.xpose.msra.mxu0 0.0
        %1041 = vmatprep.subr.mxu0 0.0
        %1042 = vmatpush1.xpose.msra.mxu0 0.0
        %1043 = vmatprep.subr.mxu0 0.0
        %1044 = vmatpush1.xpose.msra.mxu0 0.0
        %1045 = vmatprep.subr.mxu0 0.0
        %1046 = vmatpush1.xpose.msra.mxu0 0.0
        %1047 = vmatprep.subr.mxu0 0.0
        %1048 = vmatpush1.xpose.msra.mxu0 0.0
        %1049 = vmatprep.subr.mxu0 0.0
        %1050 = vmatpush1.xpose.msra.mxu0 0.0
        %1051 = vmatprep.subr.mxu0 0.0
        %1052 = vmatpush1.xpose.msra.mxu0 0.0
        %1053 = vmatprep.subr.mxu0 0.0
        %1054 = vmatpush1.xpose.msra.mxu0 0.0
        %1055 = vmatprep.subr.mxu0 0.0
        %1056 = vmatpush1.xpose.msra.mxu0 0.0
        %1057 = vmatprep.subr.mxu0 0.0
        %1058 = vmatpush1.xpose.msra.mxu0 0.0
        %1059 = vmatprep.subr.mxu0 0.0
        %1060 = vmatpush1.xpose.msra.mxu0 0.0
        %1061 = vmatprep.subr.mxu0 0.0
        %1062 = vmatpush1.xpose.msra.mxu0 0.0
        %1063 = vmatprep.subr.mxu0 0.0
        %1064 = vmatpush1.xpose.msra.mxu0 0.0
        %1065 = vmatprep.subr.mxu0 0.0
        %1066 = vmatpush1.xpose.msra.mxu0 0.0
        %1067 = vmatprep.subr.mxu0 0.0
        %1068 = vmatpush1.xpose.msra.mxu0 0.0
        %1069 = vmatprep.subr.mxu0 0.0
        %1070 = vmatpush1.xpose.msra.mxu0 0.0
        %1071 = vmatprep.subr.mxu0 0.0
        %1072 = vmatpush1.xpose.msra.mxu0 0.0
        %1073 = vmatprep.subr.mxu0 0.0
        %1074 = vmatpush1.xpose.msra.mxu0 0.0
        %1075 = vmatprep.subr.mxu0 0.0
        %1076 = vmatpush1.xpose.msra.mxu0 0.0
        %1077 = vmatprep.subr.mxu0 0.0
        %1078 = vmatpush1.xpose.msra.mxu0 0.0
        %1079 = vmatprep.subr.mxu0 0.0
        %1080 = vmatpush1.xpose.msra.mxu0 0.0
        %1081 = vmatprep.subr.mxu0 0.0
        %1082 = vmatpush1.xpose.msra.mxu0 0.0
        %1083 = vmatprep.subr.mxu0 0.0
        %1084 = vmatpush1.xpose.msra.mxu0 0.0
        %1085 = vmatprep.subr.mxu0 0.0
        %1086 = vmatpush1.xpose.msra.mxu0 0.0
        %1087 = vmatprep.subr.mxu0 0.0
        %1088 = vmatpush1.xpose.msra.mxu0 0.0
        %1089 = vmatprep.subr.mxu0 0.0
        %1090 = vmatpush1.xpose.msra.mxu0 0.0
        %1091 = vmatprep.subr.mxu0 0.0
        %1092 = vmatpush1.xpose.msra.mxu0 0.0
        %1093 = vmatprep.subr.mxu0 0.0
        %1094 = vmatpush1.xpose.msra.mxu0 0.0
        %1095 = vmatprep.mubr.f32.mxu0 0.0
        %1096 = vmatmul.mubr.f32.gmra.mrb[0].mxu0 %v1027
        %v1097 = vpop.f32.mrb[0].mxu0
        %v1098 = vadd.f32 0.0, %v1097
        %v1099 = vpop.f32.mrb[0].mxu0
        %1100 = vdwg.mxu0
        %v1101 = vsel %vm525, %v1098, -inf
        %v1102 = vsel %vm603, %v1101, -inf
        %1103 = vmax.xlane.f32.xlu0 %v1102
        %v1104 = vpop.xlane.xlu0 %1103
        %v1105 = vsub.f32 %v1101, %v1104
        %v1106 = vmul.f32 %v1105, 1.442695
        %v1107 = vpow.pop %v1106
        %v1108 = vsel %vm603, %v1107, 0.0
        %1109 = vadd.xlane.f32.xlu0 %v1108
        %v1110 = vpop.xlane.xlu0 %1109
        %v1111 = vrcp.pop %v1110
        %v1112 = vmul.f32 %v1107, %v1111
        %1113 = vrot.lane.b32.xlu0 %v514, 16
        %v1114 = vpop.permute.xlu0 %1113
        %v1117 = vsel %vm603, %v1112, 0
        %1119 = vmatprep.subr.mxu0 0.0
        %1120 = vmatpush1.msra.mxu0 %v1114
        %1121 = vmatprep.subr.mxu0 0.0
        %1122 = vmatpush1.msra.mxu0 0.0
        %1123 = vmatprep.subr.mxu0 0.0
        %1124 = vmatpush1.msra.mxu0 0.0
        %1125 = vmatprep.subr.mxu0 0.0
        %1126 = vmatpush1.msra.mxu0 0.0
        %1127 = vmatprep.subr.mxu0 0.0
        %1128 = vmatpush1.msra.mxu0 0.0
        %1129 = vmatprep.subr.mxu0 0.0
        %1130 = vmatpush1.msra.mxu0 0.0
        %1131 = vmatprep.subr.mxu0 0.0
        %1132 = vmatpush1.msra.mxu0 0.0
        %1133 = vmatprep.subr.mxu0 0.0
        %1134 = vmatpush1.msra.mxu0 0.0
        %1135 = vmatprep.subr.mxu0 0.0
        %1136 = vmatpush1.msra.mxu0 0.0
        %1137 = vmatprep.subr.mxu0 0.0
        %1138 = vmatpush1.msra.mxu0 0.0
        %1139 = vmatprep.subr.mxu0 0.0
        %1140 = vmatpush1.msra.mxu0 0.0
        %1141 = vmatprep.subr.mxu0 0.0
        %1142 = vmatpush1.msra.mxu0 0.0
        %1143 = vmatprep.subr.mxu0 0.0
        %1144 = vmatpush1.msra.mxu0 0.0
        %1145 = vmatprep.subr.mxu0 0.0
        %1146 = vmatpush1.msra.mxu0 0.0
        %1147 = vmatprep.subr.mxu0 0.0
        %1148 = vmatpush1.msra.mxu0 0.0
        %1149 = vmatprep.subr.mxu0 0.0
        %1150 = vmatpush1.msra.mxu0 0.0
        %1151 = vmatprep.subr.mxu0 0.0
        %1152 = vmatpush1.msra.mxu0 0.0
        %1153 = vmatprep.subr.mxu0 0.0
        %1154 = vmatpush1.msra.mxu0 0.0
        %1155 = vmatprep.subr.mxu0 0.0
        %1156 = vmatpush1.msra.mxu0 0.0
        %1157 = vmatprep.subr.mxu0 0.0
        %1158 = vmatpush1.msra.mxu0 0.0
        %1159 = vmatprep.subr.mxu0 0.0
        %1160 = vmatpush1.msra.mxu0 0.0
        %1161 = vmatprep.subr.mxu0 0.0
        %1162 = vmatpush1.msra.mxu0 0.0
        %1163 = vmatprep.subr.mxu0 0.0
        %1164 = vmatpush1.msra.mxu0 0.0
        %1165 = vmatprep.subr.mxu0 0.0
        %1166 = vmatpush1.msra.mxu0 0.0
        %1167 = vmatprep.subr.mxu0 0.0
        %1168 = vmatpush1.msra.mxu0 0.0
        %1169 = vmatprep.subr.mxu0 0.0
        %1170 = vmatpush1.msra.mxu0 0.0
        %1171 = vmatprep.subr.mxu0 0.0
        %1172 = vmatpush1.msra.mxu0 0.0
        %1173 = vmatprep.subr.mxu0 0.0
        %1174 = vmatpush1.msra.mxu0 0.0
        %1175 = vmatprep.subr.mxu0 0.0
        %1176 = vmatpush1.msra.mxu0 0.0
        %1177 = vmatprep.subr.mxu0 0.0
        %1178 = vmatpush1.msra.mxu0 0.0
        %1179 = vmatprep.subr.mxu0 0.0
        %1180 = vmatpush1.msra.mxu0 0.0
        %1181 = vmatprep.subr.mxu0 0.0
        %1182 = vmatpush1.msra.mxu0 0.0
        %1183 = vmatprep.mubr.f32.mxu0 0.0
        %1184 = vmatmul.mubr.f32.gmra.mrb[0].mxu0 %v1117
        %v1185 = vpop.f32.mrb[0].mxu0
        %v1186 = vadd.f32 0.0, %v1185
        %v1187 = vpop.f32.mrb[0].mxu0
        %1188 = vdwg.mxu0
        %1190 = vrot.lane.b32.xlu0 %v854, 16
        %v1191 = vpop.permute.xlu0 %1190
        %1194 = vrot.lane.b32.xlu0 %v1020, 32
        %v1195 = vpop.permute.xlu0 %1194
        %1198 = vrot.lane.b32.xlu0 %v1186, 48
        %v1199 = vpop.permute.xlu0 %1198
        %v1201 = vsel %vm368, %v688, %v1191
        %vm1202 = vcmask 261120
        %v1203 = vsel %vm1202, %v1201, %v1195
        %vm1204 = vcmask 392192
        %v1205 = vsel %vm1204, %v1203, %v1199
        %v1206 = vld [vmem:[#allocation10] sm:$0xff]
        %v1207 = vld [vmem:[#allocation10 + $0x8] sm:$0xff]
        %v1208 = vld [vmem:[#allocation10 + $0x10] sm:$0xff]
        %v1209 = vld [vmem:[#allocation10 + $0x18] sm:$0xff]
        %v1210 = vld [vmem:[#allocation10 + $0x20] sm:$0xff]
        %v1211 = vld [vmem:[#allocation10 + $0x28] sm:$0xff]
        %v1212 = vld [vmem:[#allocation10 + $0x30] sm:$0xff]
        %v1213 = vld [vmem:[#allocation10 + $0x38] sm:$0xff]
        %v1214 = vld [vmem:[%s5] sm:$0x1]
        %v1216 = vlaneseq
        %v1217 = vshrl.u32 %v1216, 7
        %v1218 = vsub.s32 0, %v1217
        %v1219 = vrot.slane %v1214, %v1218
        %vm1221 = vcmask 523264
        %v1223 = vsel %vm1221, %v1205, 0
        %1225 = vmatprep.subr.mxu0 0.0
        %1226 = vmatpush1.msra.mxu0 %v1206
        %1227 = vmatprep.subr.mxu0 0.0
        %1228 = vmatpush1.msra.mxu0 %v1207
        %1229 = vmatprep.subr.mxu0 0.0
        %1230 = vmatpush1.msra.mxu0 %v1208
        %1231 = vmatprep.subr.mxu0 0.0
        %1232 = vmatpush1.msra.mxu0 %v1209
        %1233 = vmatprep.subr.mxu0 0.0
        %1234 = vmatpush1.msra.mxu0 %v1210
        %1235 = vmatprep.subr.mxu0 0.0
        %1236 = vmatpush1.msra.mxu0 %v1211
        %1237 = vmatprep.subr.mxu0 0.0
        %1238 = vmatpush1.msra.mxu0 %v1212
        %1239 = vmatprep.subr.mxu0 0.0
        %1240 = vmatpush1.msra.mxu0 %v1213
        %1241 = vmatprep.subr.mxu0 0.0
        %1242 = vmatpush1.msra.mxu0 0.0
        %1243 = vmatprep.subr.mxu0 0.0
        %1244 = vmatpush1.msra.mxu0 0.0
        %1245 = vmatprep.subr.mxu0 0.0
        %1246 = vmatpush1.msra.mxu0 0.0
        %1247 = vmatprep.subr.mxu0 0.0
        %1248 = vmatpush1.msra.mxu0 0.0
        %1249 = vmatprep.subr.mxu0 0.0
        %1250 = vmatpush1.msra.mxu0 0.0
        %1251 = vmatprep.subr.mxu0 0.0
        %1252 = vmatpush1.msra.mxu0 0.0
        %1253 = vmatprep.subr.mxu0 0.0
        %1254 = vmatpush1.msra.mxu0 0.0
        %1255 = vmatprep.subr.mxu0 0.0
        %1256 = vmatpush1.msra.mxu0 0.0
        %1257 = vmatprep.subr.mxu0 0.0
        %1258 = vmatpush1.msra.mxu0 0.0
        %1259 = vmatprep.subr.mxu0 0.0
        %1260 = vmatpush1.msra.mxu0 0.0
        %1261 = vmatprep.subr.mxu0 0.0
        %1262 = vmatpush1.msra.mxu0 0.0
        %1263 = vmatprep.subr.mxu0 0.0
        %1264 = vmatpush1.msra.mxu0 0.0
        %1265 = vmatprep.subr.mxu0 0.0
        %1266 = vmatpush1.msra.mxu0 0.0
        %1267 = vmatprep.subr.mxu0 0.0
        %1268 = vmatpush1.msra.mxu0 0.0
        %1269 = vmatprep.subr.mxu0 0.0
        %1270 = vmatpush1.msra.mxu0 0.0
        %1271 = vmatprep.subr.mxu0 0.0
        %1272 = vmatpush1.msra.mxu0 0.0
        %1273 = vmatprep.subr.mxu0 0.0
        %1274 = vmatpush1.msra.mxu0 0.0
        %1275 = vmatprep.subr.mxu0 0.0
        %1276 = vmatpush1.msra.mxu0 0.0
        %1277 = vmatprep.subr.mxu0 0.0
        %1278 = vmatpush1.msra.mxu0 0.0
        %1279 = vmatprep.subr.mxu0 0.0
        %1280 = vmatpush1.msra.mxu0 0.0
        %1281 = vmatprep.subr.mxu0 0.0
        %1282 = vmatpush1.msra.mxu0 0.0
        %1283 = vmatprep.subr.mxu0 0.0
        %1284 = vmatpush1.msra.mxu0 0.0
        %1285 = vmatprep.subr.mxu0 0.0
        %1286 = vmatpush1.msra.mxu0 0.0
        %1287 = vmatprep.subr.mxu0 0.0
        %1288 = vmatpush1.msra.mxu0 0.0
        %1289 = vmatprep.mubr.f32.mxu0 0.0
        %1290 = vmatmul.mubr.f32.gmra.mrb[0].mxu0 %v1223
        %v1291 = vpop.f32.mrb[0].mxu0
        %v1292 = vadd.f32 %v1219, %v1291
        %v1293 = vpop.f32.mrb[0].mxu0
        %1294 = vdwg.mxu0
        %1295 = vst [vmem:[%s363] sm:$0xff] %v1292
        %s1296 = sand.u32 %s187, 1
        %s1297 = scalar_lea.sflag [#allocation4], %s1296
        %s1298 = sand.u32 %s187, 1
        %s1299 = smul.addr %s1298, 8
        %s1300 = scalar_lea.vmem [#allocation11], %s1299
        // Predicated region
        $region65: #{tpu_custom_call.1} parent=43 // pred_check
          %p1301 = pneg %p197
        $region66: #{tpu_custom_call.1} parent=43 // pred_check_branch
          %1303 = sbr.rel (%p1301) target = $region68
        $region67: #{tpu_custom_call.1} parent=43 // pred_region
          %s1305 = ssub.s32 128, 128
          %1306 = vsyncadd %s1297, %s1305
          %s1307 = sadd.s32 %s32, %s31
          %s1308 = smul.addr %s1307, 128
          %s1309 = scalar_lea.hbm %s6, %s1308
          %s1311 = sshll.u32 %s1300, 4
          %s1312 = int_to_ptr.vmem [resolvable:$true] %s1311
          %1314 = dma.vmem_to_hbm [thread:$0]  %s1312, 128, %s1309, %s1297
        $region68: #{tpu_custom_call.1} parent=43 // pred_fallthru
          _
      $region44: #{tpu_custom_call.1} parent=5 // pred_fallthru
        _
      %p1315 = scmp.le.s32.totalorder 2, %s22
      // Predicated region
      $region69: #{tpu_custom_call.1} parent=5 // pred_check
        %p1316 = pneg %p1315
      $region70: #{tpu_custom_call.1} parent=5 // pred_check_branch
        %1318 = sbr.rel (%p1316) target = $region72
      $region71: #{tpu_custom_call.1} parent=5 // pred_region
        %s1319 = ssub.s32 %s22, 2
        // Predicated region
        $region73: #{tpu_custom_call.1} parent=71 // pred_check
          %p1320 = pneg %p203
        $region74: #{tpu_custom_call.1} parent=71 // pred_check_branch
          %1322 = sbr.rel (%p1320) target = $region76
        $region75: #{tpu_custom_call.1} parent=71 // pred_region
          %s1323 = sand.u32 %s188, 1
          %s1324 = scalar_lea.sflag [#allocation4], %s1323
          %s1325 = sand.u32 %s188, 1
          %s1326 = smul.addr %s1325, 8
          %s1327 = scalar_lea.vmem [#allocation11], %s1326
          %1328 = dma.done %s1324, 128
        $region76: #{tpu_custom_call.1} parent=71 // pred_fallthru
          _
      $region72: #{tpu_custom_call.1} parent=5 // pred_fallthru
        _
    $region6: #{tpu_custom_call.1} parent=1 // loop_footer
      %s26 = sadd.s32 1, %s22
    $region7: #{tpu_custom_call.1} parent=1 // loop_footer_branch
      %21 = sbr.rel target = $region3
    $region8: #{tpu_custom_call.1} parent=1 // loop_exit
      _
    %1329 = vsyncpa [#allocation3], 1
    %s1330 = scalar_lea.sflag [#allocation3], 1
    %1331 = vsyncpa %s1330, 1
    %1332 = vsyncpa [#allocation6], 1
    %s1333 = scalar_lea.sflag [#allocation6], 1
    %1334 = vsyncpa %s1333, 1
    %1335 = vsyncpa [#allocation9], 1
    %1336 = vsyncpa [#allocation4], 1
    %s1337 = scalar_lea.sflag [#allocation4], 1
    %1338 = vsyncpa %s1337, 1

</llo_original>
